<compile_context>
chip_gen: v5e
topology: v5e:2x2
jax: 0.10.0
libtpu: 0.0.40
codegen_flags: <defaults>
</compile_context>

<pallas_src>
import functools
import math

import jax
import jax.numpy as jnp
import numpy as np
from jax.experimental import pallas as pl
from jax.experimental.pallas import tpu as pltpu


WEIGHT_KEYS = (
    "a1_w_qkv", "a1_b_qkv", "a1_w_o", "a1_b_o",
    "a2_w_q", "a2_b_q", "a2_w_kv", "a2_b_kv", "a2_w_o", "a2_b_o",
    "ln_w", "ln_b",
    "ff_w1", "ff_b1", "ff_w2", "ff_b2",
)


# ----------------------------- Pallas kernel (one batch element per grid step)

def decoder_layer_kernel(src_len_ref, x_ref, mem_ref, *rest, num_heads):
    out_ref = rest[-1]
    w = dict(zip(WEIGHT_KEYS, rest[:-1]))   # refs, NOT loaded — read at point of use

    M, D = x_ref.shape[1], x_ref.shape[2]
    S = mem_ref.shape[1]
    H = num_heads
    hd = D // H
    neg = jnp.float32(-1e30)   # finite "minus inf": exp underflows to exactly 0.0

    xb = x_ref[0]        # [M, D] f32
    memb = mem_ref[0]    # [S, D] f32

    # ---- masks built in-kernel as additive biases (no [M,M]/[1,S] f32 mask DMA) ----
    rows = jax.lax.broadcasted_iota(jnp.int32, (M, M), 0)
    cols = jax.lax.broadcasted_iota(jnp.int32, (M, M), 1)
    t_bias = jnp.where(rows >= cols, 0.0, neg)                      # causal [M, M]
    src_len = src_len_ref[pl.program_id(0)]                         # SMEM scalar read
    kpos = jax.lax.broadcasted_iota(jnp.int32, (1, S), 1)
    s_bias = jnp.where(kpos < src_len, 0.0, neg)                    # padding [1, S]
    # NOTE: neither mask ever yields a fully-masked row here (causal row 0 keeps itself,
    # src_len >= 1), so the -1e30 additive form is exactly equivalent to -inf masked_fill.

    def layer_norm(v, idx):
        g = w["ln_w"][idx]                                          # [D] f32 (tiny read)
        b = w["ln_b"][idx]
        mu = jnp.mean(v, axis=-1, keepdims=True)
        var = jnp.mean(jnp.square(v - mu), axis=-1, keepdims=True)
        return (v - mu) * jax.lax.rsqrt(var + 1e-6) * g + b

    def project(x2d, w_key, b_key):
        # ONE lane-dense [L, D] x [D, G*hd] MXU matmul, bf16 in / f32 accumulate.
        y = jnp.dot(x2d.astype(jnp.bfloat16), w[w_key][...],
                    preferred_element_type=jnp.float32)
        return y + w[b_key][...]

    def split_heads(y2d):
        # [L, H*hd] -> [H, L, hd]: static lane slices + leading-axis stack.
        # Pure data movement — all matmuls stay fused or head-batched.
        return jnp.stack([y2d[:, h * hd:(h + 1) * hd] for h in range(H)], axis=0)

    def attend(q, k, v, wo_key, bo_key, bias):
        # q [H, Lq, hd], k/v [H, Lk, hd] f32.  q already carries 1/sqrt(hd): the scale is
        # folded into the Q projection weights/bias host-side (no per-element multiply).
        s = jnp.einsum("hqd,hkd->hqk",
                       q.astype(jnp.bfloat16), k.astype(jnp.bfloat16),
                       preferred_element_type=jnp.float32)          # [H, Lq, Lk]
        s = s + bias                                                # additive mask
        m = jnp.max(s, axis=-1, keepdims=True)
        e = jnp.exp(s - m)
        p_attn = e * pl.reciprocal(jnp.sum(e, axis=-1, keepdims=True), approx=True)
        ctx = jnp.einsum("hqk,hkd->hqd",
                         p_attn.astype(jnp.bfloat16), v.astype(jnp.bfloat16),
                         preferred_element_type=jnp.float32)        # [H, Lq, hd]
        # Merge heads (lane concat) and run ONE [Lq, D] x [D, D] output projection:
        # the head reduction is a K = H*hd MXU contraction instead of a VPU sum.
        ctx2d = jnp.concatenate([ctx[h] for h in range(H)], axis=-1)
        o = jnp.dot(ctx2d.astype(jnp.bfloat16), w[wo_key][...],
                    preferred_element_type=jnp.float32)
        return o + w[bo_key][...]

    # ---- target-target self-attention (dropout == identity, inference) ----
    x_norm = layer_norm(xb, 0)
    qkv = project(x_norm, "a1_w_qkv", "a1_b_qkv")                   # [M, 3D]
    h1 = attend(split_heads(qkv[:, :D]),
                split_heads(qkv[:, D:2 * D]),
                split_heads(qkv[:, 2 * D:]),
                "a1_w_o", "a1_b_o", t_bias) + xb

    # ---- source-target cross-attention (q = LN(h1), k = v = memory) ----
    h1_norm = layer_norm(h1, 1)
    q2 = split_heads(project(h1_norm, "a2_w_q", "a2_b_q"))          # [H, M, hd]
    kv2 = project(memb, "a2_w_kv", "a2_b_kv")                       # [S, 2D]
    h2 = attend(q2,
                split_heads(kv2[:, :D]),
                split_heads(kv2[:, D:]),
                "a2_w_o", "a2_b_o", s_bias) + h1

    # ---- position-wise feed-forward (LN -> Linear -> ReLU -> Linear) + residual ----
    # TODO(synk): tile over the FF dim (extra grid axis / emit_pipeline) at FF~4096.
    x_ff = layer_norm(h2, 2)
    hidden = jnp.maximum(
        jnp.dot(x_ff.astype(jnp.bfloat16), w["ff_w1"][...],
                preferred_element_type=jnp.float32) + w["ff_b1"][...], 0.0)
    ff = jnp.dot(hidden.astype(jnp.bfloat16), w["ff_w2"][...],
                 preferred_element_type=jnp.float32) + w["ff_b2"][...]

    # D=32 here gives masked partial stores; at production D (multiple of 128) this store
    # is already lane-dense.  TODO(synk): switch to a [B, M*D] or bf16 out_spec if needed.
    out_ref[0] = ff + h2


def transformer_decoder_layer(x, memory, src_lens, params, *, num_heads):
    B, M, D = x.shape
    S = memory.shape[1]

    def const_spec(arr):
        # whole tensor resident in VMEM; constant block index => fetched once.
        # TODO(synk): pipeline_mode=pl.Buffered(1) at production weight sizes (v7x VMEM).
        nd = arr.ndim
        return pl.BlockSpec(arr.shape, lambda b, lens, _n=nd: (0,) * _n)

    weight_args = [params[k] for k in WEIGHT_KEYS]
    in_specs = [
        pl.BlockSpec((1, M, D), lambda b, lens: (b, 0, 0)),   # x
        pl.BlockSpec((1, S, D), lambda b, lens: (b, 0, 0)),   # memory
    ] + [const_spec(a) for a in weight_args]

    kernel = functools.partial(decoder_layer_kernel, num_heads=num_heads)

    return pl.pallas_call(
        kernel,
        out_shape=jax.ShapeDtypeStruct((B, M, D), jnp.float32),
        grid_spec=pltpu.PrefetchScalarGridSpec(
            num_scalar_prefetch=1,          # src_lens -> SMEM, drives the in-kernel src mask
            grid=(B,),
            in_specs=in_specs,
            out_specs=pl.BlockSpec((1, M, D), lambda b, lens: (b, 0, 0)),
        ),
        # parallel batch axis: on v7x both TensorCores each take one batch element.
        # TODO(synk): at production sizes add a q-tile grid axis so each core runs many
        #             steps (DMA/compute overlap) instead of one big private step.
        compiler_params=pltpu.CompilerParams(
            dimension_semantics=("parallel",),
            vmem_limit_bytes=48 * 1024 * 1024,   # > 16/32 MiB defaults, < 64 MiB v7x VMEM
        ),
    )(src_lens, x, memory, *weight_args)


# ----------------------------- host-side weight fusion (review items 1 & 3)

def fuse_params(raw, *, head_size):
    """Pack the raw per-layer Linear weights into lane-dense bf16 matmul operands and
    fold the 1/sqrt(head_size) attention scale into the Q projections."""
    scale = 1.0 / math.sqrt(head_size)
    a1, a2 = raw["att1"], raw["att2"]
    bf16 = jnp.bfloat16

    def row(b):
        return b[None, :].astype(jnp.float32)

    return {
        "a1_w_qkv": jnp.concatenate([a1["w_q"] * scale, a1["w_k"], a1["w_v"]], axis=1).astype(bf16),
        "a1_b_qkv": row(jnp.concatenate([a1["b_q"] * scale, a1["b_k"], a1["b_v"]])),
        "a1_w_o": a1["w_o"].astype(bf16),
        "a1_b_o": row(a1["b_o"]),
        "a2_w_q": (a2["w_q"] * scale).astype(bf16),
        "a2_b_q": row(a2["b_q"] * scale),
        "a2_w_kv": jnp.concatenate([a2["w_k"], a2["w_v"]], axis=1).astype(bf16),
        "a2_b_kv": row(jnp.concatenate([a2["b_k"], a2["b_v"]])),
        "a2_w_o": a2["w_o"].astype(bf16),
        "a2_b_o": row(a2["b_o"]),
        "ln_w": jnp.stack([raw["ln1_g"], raw["ln2_g"], raw["ln3_g"]]),
        "ln_b": jnp.stack([raw["ln1_b"], raw["ln2_b"], raw["ln3_b"]]),
        "ff_w1": raw["ff_w1"].astype(bf16),
        "ff_b1": row(raw["ff_b1"]),
        "ff_w2": raw["ff_w2"].astype(bf16),
        "ff_b2": row(raw["ff_b2"]),
    }


# ----------------------------- independent pure-JAX reference (literal PyTorch math)

def reference(x, memory, src_lens, raw, *, num_heads):
    B, M, D = x.shape
    S = memory.shape[1]
    H = num_heads
    hd = D // H
    mm = functools.partial(jnp.matmul, precision=jax.lax.Precision.HIGHEST)

    causal = jnp.arange(M)[:, None] >= jnp.arange(M)[None, :]
    trg_mask = jnp.broadcast_to(causal, (B, M, M))
    src_mask = (jnp.arange(S)[None, :] < src_lens[:, None])[:, None, :]     # [B, 1, S]

    def ln(v, g, b):
        mu = jnp.mean(v, axis=-1, keepdims=True)
        var = jnp.mean(jnp.square(v - mu), axis=-1, keepdims=True)
        return (v - mu) / jnp.sqrt(var + 1e-6) * g + b

    def mha(k_in, v_in, q_in, mask, p):
        def heads(t):  # [B, L, D] -> [B, H, L, hd]
            return t.reshape(B, -1, H, hd).transpose(0, 2, 1, 3)
        k = heads(mm(k_in, p["w_k"]) + p["b_k"])
        v = heads(mm(v_in, p["w_v"]) + p["b_v"])
        q = heads(mm(q_in, p["w_q"]) + p["b_q"]) / math.sqrt(hd)
        scores = mm(q, jnp.swapaxes(k, -1, -2))                             # [B, H, Lq, Lk]
        scores = jnp.where(mask[:, None], scores, -jnp.inf)
        attn = jax.nn.softmax(scores, axis=-1)
        ctx = mm(attn, v).transpose(0, 2, 1, 3).reshape(B, -1, H * hd)
        return mm(ctx, p["w_o"]) + p["b_o"]

    x_norm = ln(x, raw["ln1_g"], raw["ln1_b"])
    h1 = mha(x_norm, x_norm, x_norm, trg_mask, raw["att1"]) + x
    h1_norm = ln(h1, raw["ln2_g"], raw["ln2_b"])
    h2 = mha(memory, memory, h1_norm, src_mask, raw["att2"]) + h1
    x_ff = ln(h2, raw["ln3_g"], raw["ln3_b"])
    ffo = mm(jnp.maximum(mm(x_ff, raw["ff_w1"]) + raw["ff_b1"], 0.0),
             raw["ff_w2"]) + raw["ff_b2"]
    return ffo + h2


# ----------------------------- main

if __name__ == "__main__":
    B, M, S = 2, 8, 10       # batch, target length, source length
    D, FF, H = 32, 64, 4     # model size, ff size, heads
    hd = D // H

    keys = iter(jax.random.split(jax.random.PRNGKey(0), 40))

    def wmat(shape, sc=0.1):
        # f32 weights snapped to the bf16 grid: the kernel's bf16 copies are exact, so the
        # kernel-vs-reference delta only measures in-kernel bf16 activations / approx recip.
        return (sc * jax.random.normal(next(keys), shape, jnp.float32)
                ).astype(jnp.bfloat16).astype(jnp.float32)

    def vec(shape, sc=0.1):
        return sc * jax.random.normal(next(keys), shape, jnp.float32)

    x = jax.random.normal(next(keys), (B, M, D), jnp.float32)
    memory = jax.random.normal(next(keys), (B, S, D), jnp.float32)
    src_lens = jnp.array([S, S - 3], dtype=jnp.int32)   # valid source lengths per batch

    def attn_params():
        return {
            "w_q": wmat((D, D)), "b_q": vec((D,)),
            "w_k": wmat((D, D)), "b_k": vec((D,)),
            "w_v": wmat((D, D)), "b_v": vec((D,)),
            "w_o": wmat((D, D)), "b_o": vec((D,)),
        }

    raw = {
        "att1": attn_params(),
        "att2": attn_params(),
        "ln1_g": 1.0 + vec((D,)), "ln1_b": vec((D,)),
        "ln2_g": 1.0 + vec((D,)), "ln2_b": vec((D,)),
        "ln3_g": 1.0 + vec((D,)), "ln3_b": vec((D,)),
        "ff_w1": wmat((D, FF)), "ff_b1": vec((FF,)),
        "ff_w2": wmat((FF, D)), "ff_b2": vec((D,)),
    }

    params = fuse_params(raw, head_size=hd)

    out = transformer_decoder_layer(x, memory, src_lens, params, num_heads=H)
    out = jax.block_until_ready(out)

    ref = jax.block_until_ready(reference(x, memory, src_lens, raw, num_heads=H))

    assert out.shape == (B, M, D)
    # Tolerance budget: in-kernel bf16 casts of activations at every MXU matmul, the
    # bf16-rounded (scale-folded) Q weights, accumulation-order differences and the EUP
    # approximate reciprocal in the softmax denominator, vs. an f32 HIGHEST-precision
    # reference.  Outputs are O(1), so 2e-2 remains a meaningful check.
    np.testing.assert_allclose(np.asarray(out), np.asarray(ref), rtol=2e-2, atol=2e-2)

    # TODO(synk): dropout layers are treated as identity (inference mode); training-mode
    # stochastic dropout would need pltpu.prng_seed/prng_random_bits.
    print("KERNEL_OK")
</pallas_src>

<mosaic_0001>
module attributes {stable_mosaic.version = 11 : i64} {
  func.func @decoder_layer_kernel(%arg0: i32, %arg1: memref<2xi32, #tpu.memory_space<smem>>, %arg2: memref<1x8x32xf32, #tpu.memory_space<vmem>>, %arg3: memref<1x10x32xf32, #tpu.memory_space<vmem>>, %arg4: memref<32x96xbf16, #tpu.memory_space<vmem>>, %arg5: memref<1x96xf32, #tpu.memory_space<vmem>>, %arg6: memref<32x32xbf16, #tpu.memory_space<vmem>>, %arg7: memref<1x32xf32, #tpu.memory_space<vmem>>, %arg8: memref<32x32xbf16, #tpu.memory_space<vmem>>, %arg9: memref<1x32xf32, #tpu.memory_space<vmem>>, %arg10: memref<32x64xbf16, #tpu.memory_space<vmem>>, %arg11: memref<1x64xf32, #tpu.memory_space<vmem>>, %arg12: memref<32x32xbf16, #tpu.memory_space<vmem>>, %arg13: memref<1x32xf32, #tpu.memory_space<vmem>>, %arg14: memref<3x32xf32, #tpu.memory_space<vmem>>, %arg15: memref<3x32xf32, #tpu.memory_space<vmem>>, %arg16: memref<32x64xbf16, #tpu.memory_space<vmem>>, %arg17: memref<1x64xf32, #tpu.memory_space<vmem>>, %arg18: memref<64x32xbf16, #tpu.memory_space<vmem>>, %arg19: memref<1x32xf32, #tpu.memory_space<vmem>>, %arg20: memref<1x8x32xf32, #tpu.memory_space<vmem>>) attributes {dimension_semantics = [#tpu.dimension_semantics<parallel>], iteration_bounds = array<i64: 2>, scalar_prefetch = 1 : i64, scratch_operands = 0 : i64, tpu.core_type = #tpu.core_type<tc>, window_params = [{transform_indices = @transform_0, window_bounds = array<i64: 1, 8, 32>}, {transform_indices = @transform_1, window_bounds = array<i64: 1, 10, 32>}, {pipeline_mode = #tpu.pipeline_mode<synchronous>, transform_indices = @transform_2, window_bounds = array<i64: 32, 96>}, {pipeline_mode = #tpu.pipeline_mode<synchronous>, transform_indices = @transform_3, window_bounds = array<i64: 1, 96>}, {pipeline_mode = #tpu.pipeline_mode<synchronous>, transform_indices = @transform_4, window_bounds = array<i64: 32, 32>}, {pipeline_mode = #tpu.pipeline_mode<synchronous>, transform_indices = @transform_5, window_bounds = array<i64: 1, 32>}, {pipeline_mode = #tpu.pipeline_mode<synchronous>, transform_indices = @transform_6, window_bounds = array<i64: 32, 32>}, {pipeline_mode = #tpu.pipeline_mode<synchronous>, transform_indices = @transform_7, window_bounds = array<i64: 1, 32>}, {pipeline_mode = #tpu.pipeline_mode<synchronous>, transform_indices = @transform_8, window_bounds = array<i64: 32, 64>}, {pipeline_mode = #tpu.pipeline_mode<synchronous>, transform_indices = @transform_9, window_bounds = array<i64: 1, 64>}, {pipeline_mode = #tpu.pipeline_mode<synchronous>, transform_indices = @transform_10, window_bounds = array<i64: 32, 32>}, {pipeline_mode = #tpu.pipeline_mode<synchronous>, transform_indices = @transform_11, window_bounds = array<i64: 1, 32>}, {pipeline_mode = #tpu.pipeline_mode<synchronous>, transform_indices = @transform_12, window_bounds = array<i64: 3, 32>}, {pipeline_mode = #tpu.pipeline_mode<synchronous>, transform_indices = @transform_13, window_bounds = array<i64: 3, 32>}, {pipeline_mode = #tpu.pipeline_mode<synchronous>, transform_indices = @transform_14, window_bounds = array<i64: 32, 64>}, {pipeline_mode = #tpu.pipeline_mode<synchronous>, transform_indices = @transform_15, window_bounds = array<i64: 1, 64>}, {pipeline_mode = #tpu.pipeline_mode<synchronous>, transform_indices = @transform_16, window_bounds = array<i64: 64, 32>}, {pipeline_mode = #tpu.pipeline_mode<synchronous>, transform_indices = @transform_17, window_bounds = array<i64: 1, 32>}, {transform_indices = @transform_18, window_bounds = array<i64: 1, 8, 32>}]} {
    %c0 = arith.constant 0 : index
    %c0_0 = arith.constant 0 : index
    %c0_1 = arith.constant 0 : index
    %0 = vector.load %arg2[%c0, %c0_0, %c0_1] : memref<1x8x32xf32, #tpu.memory_space<vmem>>, vector<1x8x32xf32>
    %1 = vector.shape_cast %0 : vector<1x8x32xf32> to vector<8x32xf32>
    %c0_2 = arith.constant 0 : index
    %c0_3 = arith.constant 0 : index
    %c0_4 = arith.constant 0 : index
    %2 = vector.load %arg3[%c0_2, %c0_3, %c0_4] : memref<1x10x32xf32, #tpu.memory_space<vmem>>, vector<1x10x32xf32>
    %3 = vector.shape_cast %2 : vector<1x10x32xf32> to vector<10x32xf32>
    %4 = tpu.iota {dimensions = array<i32: 0>} : vector<8x8xi32>
    %5 = tpu.iota {dimensions = array<i32: 1>} : vector<8x8xi32>
    %6 = arith.cmpi sge, %4, %5 : vector<8x8xi32>
    %cst = arith.constant 0.000000e+00 : f32
    %cst_5 = arith.constant -1.000000e+30 : f32
    %7 = vector.broadcast %cst : f32 to vector<8x8xf32>
    %8 = vector.broadcast %cst_5 : f32 to vector<8x8xf32>
    %9 = arith.select %6, %7, %8 : vector<8x8xi1>, vector<8x8xf32>
    %10 = arith.index_cast %arg0 : i32 to index
    %11 = memref.load %arg1[%10] : memref<2xi32, #tpu.memory_space<smem>>
    %12 = tpu.iota {dimensions = array<i32: 1>} : vector<1x10xi32>
    %13 = vector.broadcast %11 : i32 to vector<1x10xi32>
    %14 = arith.cmpi slt, %12, %13 : vector<1x10xi32>
    %cst_6 = arith.constant 0.000000e+00 : f32
    %cst_7 = arith.constant -1.000000e+30 : f32
    %15 = vector.broadcast %cst_6 : f32 to vector<1x10xf32>
    %16 = vector.broadcast %cst_7 : f32 to vector<1x10xf32>
    %17 = arith.select %14, %15, %16 : vector<1x10xi1>, vector<1x10xf32>
    %c0_8 = arith.constant 0 : index
    %c0_9 = arith.constant 0 : index
    %18 = vector.load %arg14[%c0_8, %c0_9] : memref<3x32xf32, #tpu.memory_space<vmem>>, vector<1x32xf32>
    %19 = vector.shape_cast %18 : vector<1x32xf32> to vector<32xf32>
    %c0_10 = arith.constant 0 : index
    %c0_11 = arith.constant 0 : index
    %20 = vector.load %arg15[%c0_10, %c0_11] : memref<3x32xf32, #tpu.memory_space<vmem>>, vector<1x32xf32>
    %21 = vector.shape_cast %20 : vector<1x32xf32> to vector<32xf32>
    %cst_12 = arith.constant dense<0.000000e+00> : vector<8xf32>
    %22 = vector.multi_reduction <add>, %1, %cst_12 [1] : vector<8x32xf32> to vector<8xf32>
    %23 = vector.shape_cast %22 : vector<8xf32> to vector<8x1xf32>
    %cst_13 = arith.constant 3.200000e+01 : f32
    %24 = vector.broadcast %cst_13 : f32 to vector<8x1xf32>
    %25 = arith.divf %23, %24 : vector<8x1xf32>
    %26 = vector.broadcast %25 : vector<8x1xf32> to vector<8x32xf32>
    %27 = arith.subf %1, %26 : vector<8x32xf32>
    %28 = arith.mulf %27, %27 : vector<8x32xf32>
    %cst_14 = arith.constant dense<0.000000e+00> : vector<8xf32>
    %29 = vector.multi_reduction <add>, %28, %cst_14 [1] : vector<8x32xf32> to vector<8xf32>
    %30 = vector.shape_cast %29 : vector<8xf32> to vector<8x1xf32>
    %cst_15 = arith.constant 3.200000e+01 : f32
    %31 = vector.broadcast %cst_15 : f32 to vector<8x1xf32>
    %32 = arith.divf %30, %31 : vector<8x1xf32>
    %33 = vector.broadcast %25 : vector<8x1xf32> to vector<8x32xf32>
    %34 = arith.subf %1, %33 : vector<8x32xf32>
    %cst_16 = arith.constant 9.99999997E-7 : f32
    %35 = vector.broadcast %cst_16 : f32 to vector<8x1xf32>
    %36 = arith.addf %32, %35 : vector<8x1xf32>
    %37 = math.rsqrt %36 : vector<8x1xf32>
    %38 = vector.broadcast %37 : vector<8x1xf32> to vector<8x32xf32>
    %39 = arith.mulf %34, %38 : vector<8x32xf32>
    %40 = vector.shape_cast %19 : vector<32xf32> to vector<1x32xf32>
    %41 = vector.broadcast %40 : vector<1x32xf32> to vector<8x32xf32>
    %42 = arith.mulf %39, %41 : vector<8x32xf32>
    %43 = vector.shape_cast %21 : vector<32xf32> to vector<1x32xf32>
    %44 = vector.broadcast %43 : vector<1x32xf32> to vector<8x32xf32>
    %45 = arith.addf %42, %44 : vector<8x32xf32>
    %46 = arith.truncf %45 : vector<8x32xf32> to vector<8x32xbf16>
    %c0_17 = arith.constant 0 : index
    %c0_18 = arith.constant 0 : index
    %47 = vector.load %arg4[%c0_17, %c0_18] : memref<32x96xbf16, #tpu.memory_space<vmem>>, vector<32x96xbf16>
    %cst_19 = arith.constant dense<0.000000e+00> : vector<8x96xf32>
    %48 = tpu.matmul %46, %47, %cst_19 {dimension_numbers = #tpu.dot_dimension_numbers<[1], [0], [0], [1], [0, 0, 1, 1], [], []>} : vector<8x32xbf16>, vector<32x96xbf16>, vector<8x96xf32> -> vector<8x96xf32>
    %c0_20 = arith.constant 0 : index
    %c0_21 = arith.constant 0 : index
    %49 = vector.load %arg5[%c0_20, %c0_21] : memref<1x96xf32, #tpu.memory_space<vmem>>, vector<1x96xf32>
    %50 = vector.broadcast %49 : vector<1x96xf32> to vector<8x96xf32>
    %51 = arith.addf %48, %50 : vector<8x96xf32>
    %52 = vector.extract_strided_slice %51 {offsets = [0, 0], sizes = [8, 32], strides = [1, 1]} : vector<8x96xf32> to vector<8x32xf32>
    %53 = vector.extract_strided_slice %52 {offsets = [0, 0], sizes = [8, 8], strides = [1, 1]} : vector<8x32xf32> to vector<8x8xf32>
    %54 = vector.extract_strided_slice %52 {offsets = [0, 8], sizes = [8, 8], strides = [1, 1]} : vector<8x32xf32> to vector<8x8xf32>
    %55 = vector.extract_strided_slice %52 {offsets = [0, 16], sizes = [8, 8], strides = [1, 1]} : vector<8x32xf32> to vector<8x8xf32>
    %56 = vector.extract_strided_slice %52 {offsets = [0, 24], sizes = [8, 8], strides = [1, 1]} : vector<8x32xf32> to vector<8x8xf32>
    %57 = vector.shape_cast %53 : vector<8x8xf32> to vector<1x8x8xf32>
    %58 = vector.shape_cast %54 : vector<8x8xf32> to vector<1x8x8xf32>
    %59 = vector.shape_cast %55 : vector<8x8xf32> to vector<1x8x8xf32>
    %60 = vector.shape_cast %56 : vector<8x8xf32> to vector<1x8x8xf32>
    %61 = tpu.concatenate %57, %58, %59, %60 in 0 : vector<1x8x8xf32>, vector<1x8x8xf32>, vector<1x8x8xf32>, vector<1x8x8xf32> -> vector<4x8x8xf32>
    %62 = vector.extract_strided_slice %51 {offsets = [0, 32], sizes = [8, 32], strides = [1, 1]} : vector<8x96xf32> to vector<8x32xf32>
    %63 = vector.extract_strided_slice %62 {offsets = [0, 0], sizes = [8, 8], strides = [1, 1]} : vector<8x32xf32> to vector<8x8xf32>
    %64 = vector.extract_strided_slice %62 {offsets = [0, 8], sizes = [8, 8], strides = [1, 1]} : vector<8x32xf32> to vector<8x8xf32>
    %65 = vector.extract_strided_slice %62 {offsets = [0, 16], sizes = [8, 8], strides = [1, 1]} : vector<8x32xf32> to vector<8x8xf32>
    %66 = vector.extract_strided_slice %62 {offsets = [0, 24], sizes = [8, 8], strides = [1, 1]} : vector<8x32xf32> to vector<8x8xf32>
    %67 = vector.shape_cast %63 : vector<8x8xf32> to vector<1x8x8xf32>
    %68 = vector.shape_cast %64 : vector<8x8xf32> to vector<1x8x8xf32>
    %69 = vector.shape_cast %65 : vector<8x8xf32> to vector<1x8x8xf32>
    %70 = vector.shape_cast %66 : vector<8x8xf32> to vector<1x8x8xf32>
    %71 = tpu.concatenate %67, %68, %69, %70 in 0 : vector<1x8x8xf32>, vector<1x8x8xf32>, vector<1x8x8xf32>, vector<1x8x8xf32> -> vector<4x8x8xf32>
    %72 = vector.extract_strided_slice %51 {offsets = [0, 64], sizes = [8, 32], strides = [1, 1]} : vector<8x96xf32> to vector<8x32xf32>
    %73 = vector.extract_strided_slice %72 {offsets = [0, 0], sizes = [8, 8], strides = [1, 1]} : vector<8x32xf32> to vector<8x8xf32>
    %74 = vector.extract_strided_slice %72 {offsets = [0, 8], sizes = [8, 8], strides = [1, 1]} : vector<8x32xf32> to vector<8x8xf32>
    %75 = vector.extract_strided_slice %72 {offsets = [0, 16], sizes = [8, 8], strides = [1, 1]} : vector<8x32xf32> to vector<8x8xf32>
    %76 = vector.extract_strided_slice %72 {offsets = [0, 24], sizes = [8, 8], strides = [1, 1]} : vector<8x32xf32> to vector<8x8xf32>
    %77 = vector.shape_cast %73 : vector<8x8xf32> to vector<1x8x8xf32>
    %78 = vector.shape_cast %74 : vector<8x8xf32> to vector<1x8x8xf32>
    %79 = vector.shape_cast %75 : vector<8x8xf32> to vector<1x8x8xf32>
    %80 = vector.shape_cast %76 : vector<8x8xf32> to vector<1x8x8xf32>
    %81 = tpu.concatenate %77, %78, %79, %80 in 0 : vector<1x8x8xf32>, vector<1x8x8xf32>, vector<1x8x8xf32>, vector<1x8x8xf32> -> vector<4x8x8xf32>
    %82 = arith.truncf %61 : vector<4x8x8xf32> to vector<4x8x8xbf16>
    %83 = arith.truncf %71 : vector<4x8x8xf32> to vector<4x8x8xbf16>
    "tpu.trace_start"() <{level = 10 : i32, message = "hqd,hkd->hqk"}> : () -> ()
    %cst_22 = arith.constant dense<0.000000e+00> : vector<4x8x8xf32>
    %84 = tpu.matmul %82, %83, %cst_22 {dimension_numbers = #tpu.dot_dimension_numbers<[2], [2], [1], [1], [0, 0, 0, 1, 1, 1], [0], [0]>} : vector<4x8x8xbf16>, vector<4x8x8xbf16>, vector<4x8x8xf32> -> vector<4x8x8xf32>
    "tpu.trace_stop"() : () -> ()
    %85 = vector.shape_cast %9 : vector<8x8xf32> to vector<1x8x8xf32>
    %86 = vector.broadcast %85 : vector<1x8x8xf32> to vector<4x8x8xf32>
    %87 = arith.addf %84, %86 : vector<4x8x8xf32>
    %cst_23 = arith.constant dense<0xFF800000> : vector<4x8xf32>
    %88 = vector.multi_reduction <maximumf>, %87, %cst_23 [2] : vector<4x8x8xf32> to vector<4x8xf32>
    %89 = vector.shape_cast %88 : vector<4x8xf32> to vector<4x8x1xf32>
    %90 = vector.broadcast %89 : vector<4x8x1xf32> to vector<4x8x8xf32>
    %91 = arith.subf %87, %90 : vector<4x8x8xf32>
    %92 = math.exp %91 : vector<4x8x8xf32>
    %cst_24 = arith.constant dense<0.000000e+00> : vector<4x8xf32>
    %93 = vector.multi_reduction <add>, %92, %cst_24 [2] : vector<4x8x8xf32> to vector<4x8xf32>
    %94 = vector.shape_cast %93 : vector<4x8xf32> to vector<4x8x1xf32>
    %95 = tpu.reciprocal %94 {approx = true} : vector<4x8x1xf32> -> vector<4x8x1xf32>
    %96 = vector.broadcast %95 : vector<4x8x1xf32> to vector<4x8x8xf32>
    %97 = arith.mulf %92, %96 : vector<4x8x8xf32>
    %98 = arith.truncf %97 : vector<4x8x8xf32> to vector<4x8x8xbf16>
    %99 = arith.truncf %81 : vector<4x8x8xf32> to vector<4x8x8xbf16>
    "tpu.trace_start"() <{level = 10 : i32, message = "hqk,hkd->hqd"}> : () -> ()
    %cst_25 = arith.constant dense<0.000000e+00> : vector<4x8x8xf32>
    %100 = tpu.matmul %98, %99, %cst_25 {dimension_numbers = #tpu.dot_dimension_numbers<[2], [1], [1], [2], [0, 0, 0, 1, 1, 2], [0], [0]>} : vector<4x8x8xbf16>, vector<4x8x8xbf16>, vector<4x8x8xf32> -> vector<4x8x8xf32>
    "tpu.trace_stop"() : () -> ()
    %101 = vector.extract_strided_slice %100 {offsets = [0, 0, 0], sizes = [1, 8, 8], strides = [1, 1, 1]} : vector<4x8x8xf32> to vector<1x8x8xf32>
    %102 = vector.shape_cast %101 : vector<1x8x8xf32> to vector<8x8xf32>
    %103 = vector.extract_strided_slice %100 {offsets = [1, 0, 0], sizes = [1, 8, 8], strides = [1, 1, 1]} : vector<4x8x8xf32> to vector<1x8x8xf32>
    %104 = vector.shape_cast %103 : vector<1x8x8xf32> to vector<8x8xf32>
    %105 = vector.extract_strided_slice %100 {offsets = [2, 0, 0], sizes = [1, 8, 8], strides = [1, 1, 1]} : vector<4x8x8xf32> to vector<1x8x8xf32>
    %106 = vector.shape_cast %105 : vector<1x8x8xf32> to vector<8x8xf32>
    %107 = vector.extract_strided_slice %100 {offsets = [3, 0, 0], sizes = [1, 8, 8], strides = [1, 1, 1]} : vector<4x8x8xf32> to vector<1x8x8xf32>
    %108 = vector.shape_cast %107 : vector<1x8x8xf32> to vector<8x8xf32>
    %109 = tpu.concatenate %102, %104, %106, %108 in 1 : vector<8x8xf32>, vector<8x8xf32>, vector<8x8xf32>, vector<8x8xf32> -> vector<8x32xf32>
    %110 = arith.truncf %109 : vector<8x32xf32> to vector<8x32xbf16>
    %c0_26 = arith.constant 0 : index
    %c0_27 = arith.constant 0 : index
    %111 = vector.load %arg6[%c0_26, %c0_27] : memref<32x32xbf16, #tpu.memory_space<vmem>>, vector<32x32xbf16>
    %cst_28 = arith.constant dense<0.000000e+00> : vector<8x32xf32>
    %112 = tpu.matmul %110, %111, %cst_28 {dimension_numbers = #tpu.dot_dimension_numbers<[1], [0], [0], [1], [0, 0, 1, 1], [], []>} : vector<8x32xbf16>, vector<32x32xbf16>, vector<8x32xf32> -> vector<8x32xf32>
    %c0_29 = arith.constant 0 : index
    %c0_30 = arith.constant 0 : index
    %113 = vector.load %arg7[%c0_29, %c0_30] : memref<1x32xf32, #tpu.memory_space<vmem>>, vector<1x32xf32>
    %114 = vector.broadcast %113 : vector<1x32xf32> to vector<8x32xf32>
    %115 = arith.addf %112, %114 : vector<8x32xf32>
    %116 = arith.addf %115, %1 : vector<8x32xf32>
    %c1 = arith.constant 1 : index
    %c0_31 = arith.constant 0 : index
    %117 = vector.load %arg14[%c1, %c0_31] : memref<3x32xf32, #tpu.memory_space<vmem>>, vector<1x32xf32>
    %118 = vector.shape_cast %117 : vector<1x32xf32> to vector<32xf32>
    %c1_32 = arith.constant 1 : index
    %c0_33 = arith.constant 0 : index
    %119 = vector.load %arg15[%c1_32, %c0_33] : memref<3x32xf32, #tpu.memory_space<vmem>>, vector<1x32xf32>
    %120 = vector.shape_cast %119 : vector<1x32xf32> to vector<32xf32>
    %cst_34 = arith.constant dense<0.000000e+00> : vector<8xf32>
    %121 = vector.multi_reduction <add>, %116, %cst_34 [1] : vector<8x32xf32> to vector<8xf32>
    %122 = vector.shape_cast %121 : vector<8xf32> to vector<8x1xf32>
    %cst_35 = arith.constant 3.200000e+01 : f32
    %123 = vector.broadcast %cst_35 : f32 to vector<8x1xf32>
    %124 = arith.divf %122, %123 : vector<8x1xf32>
    %125 = vector.broadcast %124 : vector<8x1xf32> to vector<8x32xf32>
    %126 = arith.subf %116, %125 : vector<8x32xf32>
    %127 = arith.mulf %126, %126 : vector<8x32xf32>
    %cst_36 = arith.constant dense<0.000000e+00> : vector<8xf32>
    %128 = vector.multi_reduction <add>, %127, %cst_36 [1] : vector<8x32xf32> to vector<8xf32>
    %129 = vector.shape_cast %128 : vector<8xf32> to vector<8x1xf32>
    %cst_37 = arith.constant 3.200000e+01 : f32
    %130 = vector.broadcast %cst_37 : f32 to vector<8x1xf32>
    %131 = arith.divf %129, %130 : vector<8x1xf32>
    %132 = vector.broadcast %124 : vector<8x1xf32> to vector<8x32xf32>
    %133 = arith.subf %116, %132 : vector<8x32xf32>
    %cst_38 = arith.constant 9.99999997E-7 : f32
    %134 = vector.broadcast %cst_38 : f32 to vector<8x1xf32>
    %135 = arith.addf %131, %134 : vector<8x1xf32>
    %136 = math.rsqrt %135 : vector<8x1xf32>
    %137 = vector.broadcast %136 : vector<8x1xf32> to vector<8x32xf32>
    %138 = arith.mulf %133, %137 : vector<8x32xf32>
    %139 = vector.shape_cast %118 : vector<32xf32> to vector<1x32xf32>
    %140 = vector.broadcast %139 : vector<1x32xf32> to vector<8x32xf32>
    %141 = arith.mulf %138, %140 : vector<8x32xf32>
    %142 = vector.shape_cast %120 : vector<32xf32> to vector<1x32xf32>
    %143 = vector.broadcast %142 : vector<1x32xf32> to vector<8x32xf32>
    %144 = arith.addf %141, %143 : vector<8x32xf32>
    %145 = arith.truncf %144 : vector<8x32xf32> to vector<8x32xbf16>
    %c0_39 = arith.constant 0 : index
    %c0_40 = arith.constant 0 : index
    %146 = vector.load %arg8[%c0_39, %c0_40] : memref<32x32xbf16, #tpu.memory_space<vmem>>, vector<32x32xbf16>
    %cst_41 = arith.constant dense<0.000000e+00> : vector<8x32xf32>
    %147 = tpu.matmul %145, %146, %cst_41 {dimension_numbers = #tpu.dot_dimension_numbers<[1], [0], [0], [1], [0, 0, 1, 1], [], []>} : vector<8x32xbf16>, vector<32x32xbf16>, vector<8x32xf32> -> vector<8x32xf32>
    %c0_42 = arith.constant 0 : index
    %c0_43 = arith.constant 0 : index
    %148 = vector.load %arg9[%c0_42, %c0_43] : memref<1x32xf32, #tpu.memory_space<vmem>>, vector<1x32xf32>
    %149 = vector.broadcast %148 : vector<1x32xf32> to vector<8x32xf32>
    %150 = arith.addf %147, %149 : vector<8x32xf32>
    %151 = vector.extract_strided_slice %150 {offsets = [0, 0], sizes = [8, 8], strides = [1, 1]} : vector<8x32xf32> to vector<8x8xf32>
    %152 = vector.extract_strided_slice %150 {offsets = [0, 8], sizes = [8, 8], strides = [1, 1]} : vector<8x32xf32> to vector<8x8xf32>
    %153 = vector.extract_strided_slice %150 {offsets = [0, 16], sizes = [8, 8], strides = [1, 1]} : vector<8x32xf32> to vector<8x8xf32>
    %154 = vector.extract_strided_slice %150 {offsets = [0, 24], sizes = [8, 8], strides = [1, 1]} : vector<8x32xf32> to vector<8x8xf32>
    %155 = vector.shape_cast %151 : vector<8x8xf32> to vector<1x8x8xf32>
    %156 = vector.shape_cast %152 : vector<8x8xf32> to vector<1x8x8xf32>
    %157 = vector.shape_cast %153 : vector<8x8xf32> to vector<1x8x8xf32>
    %158 = vector.shape_cast %154 : vector<8x8xf32> to vector<1x8x8xf32>
    %159 = tpu.concatenate %155, %156, %157, %158 in 0 : vector<1x8x8xf32>, vector<1x8x8xf32>, vector<1x8x8xf32>, vector<1x8x8xf32> -> vector<4x8x8xf32>
    %160 = arith.truncf %3 : vector<10x32xf32> to vector<10x32xbf16>
    %c0_44 = arith.constant 0 : index
    %c0_45 = arith.constant 0 : index
    %161 = vector.load %arg10[%c0_44, %c0_45] : memref<32x64xbf16, #tpu.memory_space<vmem>>, vector<32x64xbf16>
    %cst_46 = arith.constant dense<0.000000e+00> : vector<10x64xf32>
    %162 = tpu.matmul %160, %161, %cst_46 {dimension_numbers = #tpu.dot_dimension_numbers<[1], [0], [0], [1], [0, 0, 1, 1], [], []>} : vector<10x32xbf16>, vector<32x64xbf16>, vector<10x64xf32> -> vector<10x64xf32>
    %c0_47 = arith.constant 0 : index
    %c0_48 = arith.constant 0 : index
    %163 = vector.load %arg11[%c0_47, %c0_48] : memref<1x64xf32, #tpu.memory_space<vmem>>, vector<1x64xf32>
    %164 = vector.broadcast %163 : vector<1x64xf32> to vector<10x64xf32>
    %165 = arith.addf %162, %164 : vector<10x64xf32>
    %166 = vector.extract_strided_slice %165 {offsets = [0, 0], sizes = [10, 32], strides = [1, 1]} : vector<10x64xf32> to vector<10x32xf32>
    %167 = vector.extract_strided_slice %166 {offsets = [0, 0], sizes = [10, 8], strides = [1, 1]} : vector<10x32xf32> to vector<10x8xf32>
    %168 = vector.extract_strided_slice %166 {offsets = [0, 8], sizes = [10, 8], strides = [1, 1]} : vector<10x32xf32> to vector<10x8xf32>
    %169 = vector.extract_strided_slice %166 {offsets = [0, 16], sizes = [10, 8], strides = [1, 1]} : vector<10x32xf32> to vector<10x8xf32>
    %170 = vector.extract_strided_slice %166 {offsets = [0, 24], sizes = [10, 8], strides = [1, 1]} : vector<10x32xf32> to vector<10x8xf32>
    %171 = vector.shape_cast %167 : vector<10x8xf32> to vector<1x10x8xf32>
    %172 = vector.shape_cast %168 : vector<10x8xf32> to vector<1x10x8xf32>
    %173 = vector.shape_cast %169 : vector<10x8xf32> to vector<1x10x8xf32>
    %174 = vector.shape_cast %170 : vector<10x8xf32> to vector<1x10x8xf32>
    %175 = tpu.concatenate %171, %172, %173, %174 in 0 : vector<1x10x8xf32>, vector<1x10x8xf32>, vector<1x10x8xf32>, vector<1x10x8xf32> -> vector<4x10x8xf32>
    %176 = vector.extract_strided_slice %165 {offsets = [0, 32], sizes = [10, 32], strides = [1, 1]} : vector<10x64xf32> to vector<10x32xf32>
    %177 = vector.extract_strided_slice %176 {offsets = [0, 0], sizes = [10, 8], strides = [1, 1]} : vector<10x32xf32> to vector<10x8xf32>
    %178 = vector.extract_strided_slice %176 {offsets = [0, 8], sizes = [10, 8], strides = [1, 1]} : vector<10x32xf32> to vector<10x8xf32>
    %179 = vector.extract_strided_slice %176 {offsets = [0, 16], sizes = [10, 8], strides = [1, 1]} : vector<10x32xf32> to vector<10x8xf32>
    %180 = vector.extract_strided_slice %176 {offsets = [0, 24], sizes = [10, 8], strides = [1, 1]} : vector<10x32xf32> to vector<10x8xf32>
    %181 = vector.shape_cast %177 : vector<10x8xf32> to vector<1x10x8xf32>
    %182 = vector.shape_cast %178 : vector<10x8xf32> to vector<1x10x8xf32>
    %183 = vector.shape_cast %179 : vector<10x8xf32> to vector<1x10x8xf32>
    %184 = vector.shape_cast %180 : vector<10x8xf32> to vector<1x10x8xf32>
    %185 = tpu.concatenate %181, %182, %183, %184 in 0 : vector<1x10x8xf32>, vector<1x10x8xf32>, vector<1x10x8xf32>, vector<1x10x8xf32> -> vector<4x10x8xf32>
    %186 = arith.truncf %159 : vector<4x8x8xf32> to vector<4x8x8xbf16>
    %187 = arith.truncf %175 : vector<4x10x8xf32> to vector<4x10x8xbf16>
    "tpu.trace_start"() <{level = 10 : i32, message = "hqd,hkd->hqk"}> : () -> ()
    %cst_49 = arith.constant dense<0.000000e+00> : vector<4x8x10xf32>
    %188 = tpu.matmul %186, %187, %cst_49 {dimension_numbers = #tpu.dot_dimension_numbers<[2], [2], [1], [1], [0, 0, 0, 1, 1, 1], [0], [0]>} : vector<4x8x8xbf16>, vector<4x10x8xbf16>, vector<4x8x10xf32> -> vector<4x8x10xf32>
    "tpu.trace_stop"() : () -> ()
    %189 = vector.shape_cast %17 : vector<1x10xf32> to vector<1x1x10xf32>
    %190 = vector.broadcast %189 : vector<1x1x10xf32> to vector<4x8x10xf32>
    %191 = arith.addf %188, %190 : vector<4x8x10xf32>
    %cst_50 = arith.constant dense<0xFF800000> : vector<4x8xf32>
    %192 = vector.multi_reduction <maximumf>, %191, %cst_50 [2] : vector<4x8x10xf32> to vector<4x8xf32>
    %193 = vector.shape_cast %192 : vector<4x8xf32> to vector<4x8x1xf32>
    %194 = vector.broadcast %193 : vector<4x8x1xf32> to vector<4x8x10xf32>
    %195 = arith.subf %191, %194 : vector<4x8x10xf32>
    %196 = math.exp %195 : vector<4x8x10xf32>
    %cst_51 = arith.constant dense<0.000000e+00> : vector<4x8xf32>
    %197 = vector.multi_reduction <add>, %196, %cst_51 [2] : vector<4x8x10xf32> to vector<4x8xf32>
    %198 = vector.shape_cast %197 : vector<4x8xf32> to vector<4x8x1xf32>
    %199 = tpu.reciprocal %198 {approx = true} : vector<4x8x1xf32> -> vector<4x8x1xf32>
    %200 = vector.broadcast %199 : vector<4x8x1xf32> to vector<4x8x10xf32>
    %201 = arith.mulf %196, %200 : vector<4x8x10xf32>
    %202 = arith.truncf %201 : vector<4x8x10xf32> to vector<4x8x10xbf16>
    %203 = arith.truncf %185 : vector<4x10x8xf32> to vector<4x10x8xbf16>
    "tpu.trace_start"() <{level = 10 : i32, message = "hqk,hkd->hqd"}> : () -> ()
    %cst_52 = arith.constant dense<0.000000e+00> : vector<4x8x8xf32>
    %204 = tpu.matmul %202, %203, %cst_52 {dimension_numbers = #tpu.dot_dimension_numbers<[2], [1], [1], [2], [0, 0, 0, 1, 1, 2], [0], [0]>} : vector<4x8x10xbf16>, vector<4x10x8xbf16>, vector<4x8x8xf32> -> vector<4x8x8xf32>
    "tpu.trace_stop"() : () -> ()
    %205 = vector.extract_strided_slice %204 {offsets = [0, 0, 0], sizes = [1, 8, 8], strides = [1, 1, 1]} : vector<4x8x8xf32> to vector<1x8x8xf32>
    %206 = vector.shape_cast %205 : vector<1x8x8xf32> to vector<8x8xf32>
    %207 = vector.extract_strided_slice %204 {offsets = [1, 0, 0], sizes = [1, 8, 8], strides = [1, 1, 1]} : vector<4x8x8xf32> to vector<1x8x8xf32>
    %208 = vector.shape_cast %207 : vector<1x8x8xf32> to vector<8x8xf32>
    %209 = vector.extract_strided_slice %204 {offsets = [2, 0, 0], sizes = [1, 8, 8], strides = [1, 1, 1]} : vector<4x8x8xf32> to vector<1x8x8xf32>
    %210 = vector.shape_cast %209 : vector<1x8x8xf32> to vector<8x8xf32>
    %211 = vector.extract_strided_slice %204 {offsets = [3, 0, 0], sizes = [1, 8, 8], strides = [1, 1, 1]} : vector<4x8x8xf32> to vector<1x8x8xf32>
    %212 = vector.shape_cast %211 : vector<1x8x8xf32> to vector<8x8xf32>
    %213 = tpu.concatenate %206, %208, %210, %212 in 1 : vector<8x8xf32>, vector<8x8xf32>, vector<8x8xf32>, vector<8x8xf32> -> vector<8x32xf32>
    %214 = arith.truncf %213 : vector<8x32xf32> to vector<8x32xbf16>
    %c0_53 = arith.constant 0 : index
    %c0_54 = arith.constant 0 : index
    %215 = vector.load %arg12[%c0_53, %c0_54] : memref<32x32xbf16, #tpu.memory_space<vmem>>, vector<32x32xbf16>
    %cst_55 = arith.constant dense<0.000000e+00> : vector<8x32xf32>
    %216 = tpu.matmul %214, %215, %cst_55 {dimension_numbers = #tpu.dot_dimension_numbers<[1], [0], [0], [1], [0, 0, 1, 1], [], []>} : vector<8x32xbf16>, vector<32x32xbf16>, vector<8x32xf32> -> vector<8x32xf32>
    %c0_56 = arith.constant 0 : index
    %c0_57 = arith.constant 0 : index
    %217 = vector.load %arg13[%c0_56, %c0_57] : memref<1x32xf32, #tpu.memory_space<vmem>>, vector<1x32xf32>
    %218 = vector.broadcast %217 : vector<1x32xf32> to vector<8x32xf32>
    %219 = arith.addf %216, %218 : vector<8x32xf32>
    %220 = arith.addf %219, %116 : vector<8x32xf32>
    %c2 = arith.constant 2 : index
    %c0_58 = arith.constant 0 : index
    %221 = vector.load %arg14[%c2, %c0_58] : memref<3x32xf32, #tpu.memory_space<vmem>>, vector<1x32xf32>
    %222 = vector.shape_cast %221 : vector<1x32xf32> to vector<32xf32>
    %c2_59 = arith.constant 2 : index
    %c0_60 = arith.constant 0 : index
    %223 = vector.load %arg15[%c2_59, %c0_60] : memref<3x32xf32, #tpu.memory_space<vmem>>, vector<1x32xf32>
    %224 = vector.shape_cast %223 : vector<1x32xf32> to vector<32xf32>
    %cst_61 = arith.constant dense<0.000000e+00> : vector<8xf32>
    %225 = vector.multi_reduction <add>, %220, %cst_61 [1] : vector<8x32xf32> to vector<8xf32>
    %226 = vector.shape_cast %225 : vector<8xf32> to vector<8x1xf32>
    %cst_62 = arith.constant 3.200000e+01 : f32
    %227 = vector.broadcast %cst_62 : f32 to vector<8x1xf32>
    %228 = arith.divf %226, %227 : vector<8x1xf32>
    %229 = vector.broadcast %228 : vector<8x1xf32> to vector<8x32xf32>
    %230 = arith.subf %220, %229 : vector<8x32xf32>
    %231 = arith.mulf %230, %230 : vector<8x32xf32>
    %cst_63 = arith.constant dense<0.000000e+00> : vector<8xf32>
    %232 = vector.multi_reduction <add>, %231, %cst_63 [1] : vector<8x32xf32> to vector<8xf32>
    %233 = vector.shape_cast %232 : vector<8xf32> to vector<8x1xf32>
    %cst_64 = arith.constant 3.200000e+01 : f32
    %234 = vector.broadcast %cst_64 : f32 to vector<8x1xf32>
    %235 = arith.divf %233, %234 : vector<8x1xf32>
    %236 = vector.broadcast %228 : vector<8x1xf32> to vector<8x32xf32>
    %237 = arith.subf %220, %236 : vector<8x32xf32>
    %cst_65 = arith.constant 9.99999997E-7 : f32
    %238 = vector.broadcast %cst_65 : f32 to vector<8x1xf32>
    %239 = arith.addf %235, %238 : vector<8x1xf32>
    %240 = math.rsqrt %239 : vector<8x1xf32>
    %241 = vector.broadcast %240 : vector<8x1xf32> to vector<8x32xf32>
    %242 = arith.mulf %237, %241 : vector<8x32xf32>
    %243 = vector.shape_cast %222 : vector<32xf32> to vector<1x32xf32>
    %244 = vector.broadcast %243 : vector<1x32xf32> to vector<8x32xf32>
    %245 = arith.mulf %242, %244 : vector<8x32xf32>
    %246 = vector.shape_cast %224 : vector<32xf32> to vector<1x32xf32>
    %247 = vector.broadcast %246 : vector<1x32xf32> to vector<8x32xf32>
    %248 = arith.addf %245, %247 : vector<8x32xf32>
    %249 = arith.truncf %248 : vector<8x32xf32> to vector<8x32xbf16>
    %c0_66 = arith.constant 0 : index
    %c0_67 = arith.constant 0 : index
    %250 = vector.load %arg16[%c0_66, %c0_67] : memref<32x64xbf16, #tpu.memory_space<vmem>>, vector<32x64xbf16>
    %cst_68 = arith.constant dense<0.000000e+00> : vector<8x64xf32>
    %251 = tpu.matmul %249, %250, %cst_68 {dimension_numbers = #tpu.dot_dimension_numbers<[1], [0], [0], [1], [0, 0, 1, 1], [], []>} : vector<8x32xbf16>, vector<32x64xbf16>, vector<8x64xf32> -> vector<8x64xf32>
    %c0_69 = arith.constant 0 : index
    %c0_70 = arith.constant 0 : index
    %252 = vector.load %arg17[%c0_69, %c0_70] : memref<1x64xf32, #tpu.memory_space<vmem>>, vector<1x64xf32>
    %253 = vector.broadcast %252 : vector<1x64xf32> to vector<8x64xf32>
    %254 = arith.addf %251, %253 : vector<8x64xf32>
    %cst_71 = arith.constant 0.000000e+00 : f32
    %255 = vector.broadcast %cst_71 : f32 to vector<8x64xf32>
    %256 = arith.maximumf %254, %255 : vector<8x64xf32>
    %257 = arith.truncf %256 : vector<8x64xf32> to vector<8x64xbf16>
    %c0_72 = arith.constant 0 : index
    %c0_73 = arith.constant 0 : index
    %258 = vector.load %arg18[%c0_72, %c0_73] : memref<64x32xbf16, #tpu.memory_space<vmem>>, vector<64x32xbf16>
    %cst_74 = arith.constant dense<0.000000e+00> : vector<8x32xf32>
    %259 = tpu.matmul %257, %258, %cst_74 {dimension_numbers = #tpu.dot_dimension_numbers<[1], [0], [0], [1], [0, 0, 1, 1], [], []>} : vector<8x64xbf16>, vector<64x32xbf16>, vector<8x32xf32> -> vector<8x32xf32>
    %c0_75 = arith.constant 0 : index
    %c0_76 = arith.constant 0 : index
    %260 = vector.load %arg19[%c0_75, %c0_76] : memref<1x32xf32, #tpu.memory_space<vmem>>, vector<1x32xf32>
    %261 = vector.broadcast %260 : vector<1x32xf32> to vector<8x32xf32>
    %262 = arith.addf %259, %261 : vector<8x32xf32>
    %263 = arith.addf %262, %220 : vector<8x32xf32>
    %c0_77 = arith.constant 0 : index
    %c0_78 = arith.constant 0 : index
    %c0_79 = arith.constant 0 : index
    %264 = vector.load %arg20[%c0_77, %c0_78, %c0_79] : memref<1x8x32xf32, #tpu.memory_space<vmem>>, vector<1x8x32xf32>
    %265 = vector.shape_cast %264 : vector<1x8x32xf32> to vector<8x32xf32>
    %266 = vector.shape_cast %263 : vector<8x32xf32> to vector<1x8x32xf32>
    tpu.vector_store %arg20[%c0_77, %c0_78, %c0_79], %266 {strides = array<i32>} : memref<1x8x32xf32, #tpu.memory_space<vmem>>, vector<1x8x32xf32>,
    return
  }
  func.func @transform_0(%arg0: i32, %arg1: memref<2xi32, #tpu.memory_space<smem>>) -> (i32, i32, i32) {
    %c0_i32 = arith.constant 0 : i32
    %c0_i32_0 = arith.constant 0 : i32
    %c0_i32_1 = arith.constant 0 : i32
    return %arg0, %c0_i32, %c0_i32_0 : i32, i32, i32
  }
  func.func @transform_1(%arg0: i32, %arg1: memref<2xi32, #tpu.memory_space<smem>>) -> (i32, i32, i32) {
    %c0_i32 = arith.constant 0 : i32
    %c0_i32_0 = arith.constant 0 : i32
    %c0_i32_1 = arith.constant 0 : i32
    return %arg0, %c0_i32, %c0_i32_0 : i32, i32, i32
  }
  func.func @transform_2(%arg0: i32, %arg1: memref<2xi32, #tpu.memory_space<smem>>) -> (i32, i32) {
    %c0_i32 = arith.constant 0 : i32
    %c0_i32_0 = arith.constant 0 : i32
    %c0_i32_1 = arith.constant 0 : i32
    return %c0_i32, %c0_i32_0 : i32, i32
  }
  func.func @transform_3(%arg0: i32, %arg1: memref<2xi32, #tpu.memory_space<smem>>) -> (i32, i32) {
    %c0_i32 = arith.constant 0 : i32
    %c0_i32_0 = arith.constant 0 : i32
    %c0_i32_1 = arith.constant 0 : i32
    return %c0_i32, %c0_i32_0 : i32, i32
  }
  func.func @transform_4(%arg0: i32, %arg1: memref<2xi32, #tpu.memory_space<smem>>) -> (i32, i32) {
    %c0_i32 = arith.constant 0 : i32
    %c0_i32_0 = arith.constant 0 : i32
    %c0_i32_1 = arith.constant 0 : i32
    return %c0_i32, %c0_i32_0 : i32, i32
  }
  func.func @transform_5(%arg0: i32, %arg1: memref<2xi32, #tpu.memory_space<smem>>) -> (i32, i32) {
    %c0_i32 = arith.constant 0 : i32
    %c0_i32_0 = arith.constant 0 : i32
    %c0_i32_1 = arith.constant 0 : i32
    return %c0_i32, %c0_i32_0 : i32, i32
  }
  func.func @transform_6(%arg0: i32, %arg1: memref<2xi32, #tpu.memory_space<smem>>) -> (i32, i32) {
    %c0_i32 = arith.constant 0 : i32
    %c0_i32_0 = arith.constant 0 : i32
    %c0_i32_1 = arith.constant 0 : i32
    return %c0_i32, %c0_i32_0 : i32, i32
  }
  func.func @transform_7(%arg0: i32, %arg1: memref<2xi32, #tpu.memory_space<smem>>) -> (i32, i32) {
    %c0_i32 = arith.constant 0 : i32
    %c0_i32_0 = arith.constant 0 : i32
    %c0_i32_1 = arith.constant 0 : i32
    return %c0_i32, %c0_i32_0 : i32, i32
  }
  func.func @transform_8(%arg0: i32, %arg1: memref<2xi32, #tpu.memory_space<smem>>) -> (i32, i32) {
    %c0_i32 = arith.constant 0 : i32
    %c0_i32_0 = arith.constant 0 : i32
    %c0_i32_1 = arith.constant 0 : i32
    return %c0_i32, %c0_i32_0 : i32, i32
  }
  func.func @transform_9(%arg0: i32, %arg1: memref<2xi32, #tpu.memory_space<smem>>) -> (i32, i32) {
    %c0_i32 = arith.constant 0 : i32
    %c0_i32_0 = arith.constant 0 : i32
    %c0_i32_1 = arith.constant 0 : i32
    return %c0_i32, %c0_i32_0 : i32, i32
  }
  func.func @transform_10(%arg0: i32, %arg1: memref<2xi32, #tpu.memory_space<smem>>) -> (i32, i32) {
    %c0_i32 = arith.constant 0 : i32
    %c0_i32_0 = arith.constant 0 : i32
    %c0_i32_1 = arith.constant 0 : i32
    return %c0_i32, %c0_i32_0 : i32, i32
  }
  func.func @transform_11(%arg0: i32, %arg1: memref<2xi32, #tpu.memory_space<smem>>) -> (i32, i32) {
    %c0_i32 = arith.constant 0 : i32
    %c0_i32_0 = arith.constant 0 : i32
    %c0_i32_1 = arith.constant 0 : i32
    return %c0_i32, %c0_i32_0 : i32, i32
  }
  func.func @transform_12(%arg0: i32, %arg1: memref<2xi32, #tpu.memory_space<smem>>) -> (i32, i32) {
    %c0_i32 = arith.constant 0 : i32
    %c0_i32_0 = arith.constant 0 : i32
    %c0_i32_1 = arith.constant 0 : i32
    return %c0_i32, %c0_i32_0 : i32, i32
  }
  func.func @transform_13(%arg0: i32, %arg1: memref<2xi32, #tpu.memory_space<smem>>) -> (i32, i32) {
    %c0_i32 = arith.constant 0 : i32
    %c0_i32_0 = arith.constant 0 : i32
    %c0_i32_1 = arith.constant 0 : i32
    return %c0_i32, %c0_i32_0 : i32, i32
  }
  func.func @transform_14(%arg0: i32, %arg1: memref<2xi32, #tpu.memory_space<smem>>) -> (i32, i32) {
    %c0_i32 = arith.constant 0 : i32
    %c0_i32_0 = arith.constant 0 : i32
    %c0_i32_1 = arith.constant 0 : i32
    return %c0_i32, %c0_i32_0 : i32, i32
  }
  func.func @transform_15(%arg0: i32, %arg1: memref<2xi32, #tpu.memory_space<smem>>) -> (i32, i32) {
    %c0_i32 = arith.constant 0 : i32
    %c0_i32_0 = arith.constant 0 : i32
    %c0_i32_1 = arith.constant 0 : i32
    return %c0_i32, %c0_i32_0 : i32, i32
  }
  func.func @transform_16(%arg0: i32, %arg1: memref<2xi32, #tpu.memory_space<smem>>) -> (i32, i32) {
    %c0_i32 = arith.constant 0 : i32
    %c0_i32_0 = arith.constant 0 : i32
    %c0_i32_1 = arith.constant 0 : i32
    return %c0_i32, %c0_i32_0 : i32, i32
  }
  func.func @transform_17(%arg0: i32, %arg1: memref<2xi32, #tpu.memory_space<smem>>) -> (i32, i32) {
    %c0_i32 = arith.constant 0 : i32
    %c0_i32_0 = arith.constant 0 : i32
    %c0_i32_1 = arith.constant 0 : i32
    return %c0_i32, %c0_i32_0 : i32, i32
  }
  func.func @transform_18(%arg0: i32, %arg1: memref<2xi32, #tpu.memory_space<smem>>) -> (i32, i32, i32) {
    %c0_i32 = arith.constant 0 : i32
    %c0_i32_0 = arith.constant 0 : i32
    %c0_i32_1 = arith.constant 0 : i32
    return %arg0, %c0_i32, %c0_i32_0 : i32, i32, i32
  }
}

</mosaic_0001>

<llo_original>
// kernel: tpu_custom_call.1
$region0: #{tpu_custom_call.1}
  #allocation0 [shape = 'u32[]', space=smem, size = 0x4, offset = 0x4, fixed_abs, tag = 'smem constant byte address 0x4 - core index']
  #allocation1 [shape = 'u32[72,128]{1,0:T(1,128)}', space=vmem, size = 0x9000, scoped, tag = 'internal scratch']
  #allocation2 [shape = 's32[1]{0}', space=sflag, size = 0x4, scoped, tag = 'scoped memory for tpu_custom_call.1']
  #allocation3 [shape = 'u8[512]{0}', space=smem, size = 0x200, scoped, tag = 'prefetched SMEM operand 0']
  %s0 = inlined_call_operand.vmem [shape: s32[2], index: 0, kind: input, shape index: {}]
  %s1 = inlined_call_operand.vmem [shape: f32[2,8,32], index: 1, kind: input, shape index: {}]
  %s2 = inlined_call_operand.vmem [shape: f32[2,10,32], index: 2, kind: input, shape index: {}]
  %s3 = inlined_call_operand.vmem [shape: bf16[32,96], index: 3, kind: input, shape index: {}]
  %s4 = inlined_call_operand.hbm [shape: f32[1,96], index: 4, kind: input, shape index: {}]
  %s5 = inlined_call_operand.vmem [shape: bf16[32,32], index: 5, kind: input, shape index: {}]
  %s6 = inlined_call_operand.hbm [shape: f32[1,32], index: 6, kind: input, shape index: {}]
  %s7 = inlined_call_operand.vmem [shape: bf16[32,32], index: 7, kind: input, shape index: {}]
  %s8 = inlined_call_operand.hbm [shape: f32[1,32], index: 8, kind: input, shape index: {}]
  %s9 = inlined_call_operand.vmem [shape: bf16[32,64], index: 9, kind: input, shape index: {}]
  %s10 = inlined_call_operand.hbm [shape: f32[1,64], index: 10, kind: input, shape index: {}]
  %s11 = inlined_call_operand.hbm [shape: bf16[32,32], index: 11, kind: input, shape index: {}]
  %s12 = inlined_call_operand.hbm [shape: f32[1,32], index: 12, kind: input, shape index: {}]
  %s13 = inlined_call_operand.hbm [shape: f32[3,32], index: 13, kind: input, shape index: {}]
  %s14 = inlined_call_operand.hbm [shape: f32[3,32], index: 14, kind: input, shape index: {}]
  %s15 = inlined_call_operand.vmem [shape: bf16[32,64], index: 15, kind: input, shape index: {}]
  %s16 = inlined_call_operand.vmem [shape: f32[1,64], index: 16, kind: input, shape index: {}]
  %s17 = inlined_call_operand.vmem [shape: bf16[64,32], index: 17, kind: input, shape index: {}]
  %s18 = inlined_call_operand.vmem [shape: f32[1,32], index: 18, kind: input, shape index: {}]
  %s19 = inlined_call_operand.hbm [shape: f32[2,8,32], index: 19, kind: output, shape index: {}]
  %s20 = sld [smem:[#allocation0]]
  $region137: #{tpu_custom_call.1} parent=0
    _
  %s22 = ssub.s32 1, %s20
  %s23 = scalar_select 0, %s22, %s20
  %s25 = sshll.u32 %s0, 4
  %s26 = int_to_ptr.vmem [resolvable:$true] %s25
  %28 = dma.vmem_to_smem %s26, 16, [#allocation3], [#allocation2]
  %30 = dma.done [#allocation2], 16
  %31 = sfence
  $region1: #{tpu_custom_call.1} parent=0
    #allocation4 [shape = 'u8[512]{0}', space=vmem, size = 0x400, scoped, tag = 'input window, operand 4, single buffered']
    #allocation5 [shape = 's32[2]{0}', space=sflag, size = 0x8, scoped, tag = 'scoped memory for tpu_custom_call.1']
    #allocation6 [shape = 's32[2]{0}', space=sflag, size = 0x8, scoped, tag = 'scoped memory for tpu_custom_call.1']
    #allocation7 [shape = 'u8[512]{0}', space=vmem, size = 0x400, scoped, tag = 'input window, operand 6, single buffered']
    #allocation8 [shape = 's32[1]{0}', space=sflag, size = 0x4, scoped, tag = 'scoped memory for tpu_custom_call.1']
    #allocation9 [shape = 'u8[512]{0}', space=vmem, size = 0x400, scoped, tag = 'input window, operand 8, single buffered']
    #allocation10 [shape = 'u8[512]{0}', space=vmem, size = 0x400, scoped, tag = 'input window, operand 10, single buffered']
    #allocation11 [shape = 's32[1]{0}', space=sflag, size = 0x4, scoped, tag = 'scoped memory for tpu_custom_call.1']
    #allocation12 [shape = 'u8[8192]{0}', space=vmem, size = 0x2000, scoped, tag = 'input window, operand 11, single buffered']
    #allocation13 [shape = 'u8[512]{0}', space=vmem, size = 0x400, scoped, tag = 'input window, operand 12, single buffered']
    #allocation14 [shape = 's32[1]{0}', space=sflag, size = 0x4, scoped, tag = 'scoped memory for tpu_custom_call.1']
    #allocation15 [shape = 'u8[2048]{0}', space=vmem, size = 0x800, scoped, tag = 'input window, operand 13, single buffered']
    #allocation16 [shape = 'u8[2048]{0}', space=vmem, size = 0x800, scoped, tag = 'input window, operand 14, single buffered']
    #allocation17 [shape = 's32[1]{0}', space=sflag, size = 0x4, scoped, tag = 'scoped memory for tpu_custom_call.1']
    #allocation18 [shape = 'u8[8192]{0}', space=vmem, size = 0x2000, scoped, tag = 'output window, operand 0']
    %32 = vsyncpa [#allocation5], 0
    %33 = vsyncpa [#allocation8], 0
    %34 = vsyncpa [#allocation11], 0
    %35 = vsyncpa [#allocation14], 0
    %36 = vsyncpa [#allocation17], 0
    %37 = vsyncpa [#allocation6], 0
    %s38 = scalar_lea.sflag [#allocation6], 1
    %39 = vsyncpa %s38, 0
    loop: start=0, step=1, limit=4
    $region2: #{tpu_custom_call.1} parent=1 // loop_pre_header
      _
    $region3: #{tpu_custom_call.1} parent=1 // loop_header
      %s41 = sphi 0, %s45
      %p42 = scmp.ge.s32.totalorder %s41, 4
      %s51 = sphi 0, %s53
      %s54 = sphi 0, %s51
      %s55 = sphi 0, %s54
      %s71 = sphi 0, %s55
      %s77 = sphi 0, %s79
      %s80 = sphi 0, %s77
      %s81 = sphi 0, %s80
      %s97 = sphi 0, %s81
      %s101 = sphi 0, %s101
      %s103 = sphi 0, %s101
      %s104 = sphi 0, %s103
      %s118 = sphi 0, %s104
      %s122 = sphi 0, %s122
      %s124 = sphi 0, %s122
      %s125 = sphi 0, %s124
      %s139 = sphi 0, %s125
      %s143 = sphi 0, %s143
      %s145 = sphi 0, %s143
      %s146 = sphi 0, %s145
      %s160 = sphi 0, %s146
      %s164 = sphi 0, %s164
      %s166 = sphi 0, %s164
      %s167 = sphi 0, %s166
      %s181 = sphi 0, %s167
      %s185 = sphi 0, %s185
      %s187 = sphi 0, %s185
      %s188 = sphi 0, %s187
      %s202 = sphi 0, %s188
      %s206 = sphi 0, %s206
      %s208 = sphi 0, %s206
      %s209 = sphi 0, %s208
      %s223 = sphi 0, %s209
      %s227 = sphi 0, %s227
      %s229 = sphi 0, %s227
      %s230 = sphi 0, %s229
      %s244 = sphi 0, %s230
      %s248 = sphi 0, %s248
      %s250 = sphi 0, %s248
      %s251 = sphi 0, %s250
      %s265 = sphi 0, %s251
      %s269 = sphi 0, %s269
      %s271 = sphi 0, %s269
      %s272 = sphi 0, %s271
      %s286 = sphi 0, %s272
      %s290 = sphi 0, %s290
      %s292 = sphi 0, %s290
      %s293 = sphi 0, %s292
      %s307 = sphi 0, %s293
      %s311 = sphi 0, %s311
      %s313 = sphi 0, %s311
      %s314 = sphi 0, %s313
      %s328 = sphi 0, %s314
      %s332 = sphi 0, %s332
      %s334 = sphi 0, %s332
      %s335 = sphi 0, %s334
      %s349 = sphi 0, %s335
      %s353 = sphi 0, %s353
      %s355 = sphi 0, %s353
      %s356 = sphi 0, %s355
      %s370 = sphi 0, %s356
      %s374 = sphi 0, %s374
      %s376 = sphi 0, %s374
      %s377 = sphi 0, %s376
      %s391 = sphi 0, %s377
      %s395 = sphi 0, %s395
      %s397 = sphi 0, %s395
      %s398 = sphi 0, %s397
      %s412 = sphi 0, %s398
      %s416 = sphi 0, %s416
      %s418 = sphi 0, %s416
      %s419 = sphi 0, %s418
      %s433 = sphi 0, %s419
      %s439 = sphi 0, %s441
      %s442 = sphi 0, %s439
      %s443 = sphi 0, %s442
      %s459 = sphi 0, %s443
    $region4: #{tpu_custom_call.1} parent=1 // loop_header_branch
      %44 = sbr.rel (%p42) target = $region8
    $region5: #{tpu_custom_call.1} parent=1 // loop_body
      %s46 = ssub.s32 %s41, 1
      %s47 = ssub.s32 %s41, 2
      %s48 = sadd.s32 %s41, 1
      %s49 = ssub.s32 %s41, %s48
      %p50 = scmp.eq.s32.totalorder %s49, 0
      %s52 = sadd.s32 %s51, 1
      %s53 = scalar_select %p50, %s51, %s52
      %p56 = pneg %p50
      %p57 = scmp.eq.s32.totalorder %s41, 1
      %p58 = por %p56, %p57
      %p59 = scmp.ne.s32.totalorder %s51, %s54
      %p60 = scmp.eq.s32.totalorder %s41, 0
      %p61 = por %p59, %p60
      %p62 = scmp.ne.s32.totalorder %s51, %s54
      %p63 = scmp.eq.s32.totalorder %s46, 1
      %p64 = por %p62, %p63
      %p65 = scmp.ne.s32.totalorder %s54, %s55
      %p66 = scmp.eq.s32.totalorder %s46, 0
      %p67 = por %p65, %p66
      %p68 = scmp.ne.s32.totalorder %s54, %s55
      %p69 = scmp.eq.s32.totalorder %s47, 1
      %p70 = por %p68, %p69
      %p72 = scmp.ne.s32.totalorder %s55, %s71
      %p73 = scmp.eq.s32.totalorder %s47, 0
      %p74 = por %p72, %p73
      %s75 = ssub.s32 %s41, %s48
      %p76 = scmp.eq.s32.totalorder %s75, 0
      %s78 = sadd.s32 %s77, 1
      %s79 = scalar_select %p76, %s77, %s78
      %p82 = pneg %p76
      %p83 = scmp.eq.s32.totalorder %s41, 1
      %p84 = por %p82, %p83
      %p85 = scmp.ne.s32.totalorder %s77, %s80
      %p86 = scmp.eq.s32.totalorder %s41, 0
      %p87 = por %p85, %p86
      %p88 = scmp.ne.s32.totalorder %s77, %s80
      %p89 = scmp.eq.s32.totalorder %s46, 1
      %p90 = por %p88, %p89
      %p91 = scmp.ne.s32.totalorder %s80, %s81
      %p92 = scmp.eq.s32.totalorder %s46, 0
      %p93 = por %p91, %p92
      %p94 = scmp.ne.s32.totalorder %s80, %s81
      %p95 = scmp.eq.s32.totalorder %s47, 1
      %p96 = por %p94, %p95
      %p98 = scmp.ne.s32.totalorder %s81, %s97
      %p99 = scmp.eq.s32.totalorder %s47, 0
      %p100 = por %p98, %p99
      %s102 = sadd.s32 %s101, 1
      %p105 = scmp.eq.s32.totalorder %s41, 1
      %p106 = scmp.ne.s32.totalorder %s101, %s103
      %p107 = scmp.eq.s32.totalorder %s41, 0
      %p108 = por %p106, %p107
      %p109 = scmp.ne.s32.totalorder %s101, %s103
      %p110 = scmp.eq.s32.totalorder %s46, 1
      %p111 = por %p109, %p110
      %p112 = scmp.ne.s32.totalorder %s103, %s104
      %p113 = scmp.eq.s32.totalorder %s46, 0
      %p114 = por %p112, %p113
      %p115 = scmp.ne.s32.totalorder %s103, %s104
      %p116 = scmp.eq.s32.totalorder %s47, 1
      %p117 = por %p115, %p116
      %p119 = scmp.ne.s32.totalorder %s104, %s118
      %p120 = scmp.eq.s32.totalorder %s47, 0
      %p121 = por %p119, %p120
      %s123 = sadd.s32 %s122, 1
      %p126 = scmp.eq.s32.totalorder %s41, 1
      %p127 = scmp.ne.s32.totalorder %s122, %s124
      %p128 = scmp.eq.s32.totalorder %s41, 0
      %p129 = por %p127, %p128
      %p130 = scmp.ne.s32.totalorder %s122, %s124
      %p131 = scmp.eq.s32.totalorder %s46, 1
      %p132 = por %p130, %p131
      %p133 = scmp.ne.s32.totalorder %s124, %s125
      %p134 = scmp.eq.s32.totalorder %s46, 0
      %p135 = por %p133, %p134
      %p136 = scmp.ne.s32.totalorder %s124, %s125
      %p137 = scmp.eq.s32.totalorder %s47, 1
      %p138 = por %p136, %p137
      %p140 = scmp.ne.s32.totalorder %s125, %s139
      %p141 = scmp.eq.s32.totalorder %s47, 0
      %p142 = por %p140, %p141
      %s144 = sadd.s32 %s143, 1
      %p147 = scmp.eq.s32.totalorder %s41, 1
      %p148 = scmp.ne.s32.totalorder %s143, %s145
      %p149 = scmp.eq.s32.totalorder %s41, 0
      %p150 = por %p148, %p149
      %p151 = scmp.ne.s32.totalorder %s143, %s145
      %p152 = scmp.eq.s32.totalorder %s46, 1
      %p153 = por %p151, %p152
      %p154 = scmp.ne.s32.totalorder %s145, %s146
      %p155 = scmp.eq.s32.totalorder %s46, 0
      %p156 = por %p154, %p155
      %p157 = scmp.ne.s32.totalorder %s145, %s146
      %p158 = scmp.eq.s32.totalorder %s47, 1
      %p159 = por %p157, %p158
      %p161 = scmp.ne.s32.totalorder %s146, %s160
      %p162 = scmp.eq.s32.totalorder %s47, 0
      %p163 = por %p161, %p162
      %s165 = sadd.s32 %s164, 1
      %p168 = scmp.eq.s32.totalorder %s41, 1
      %p169 = scmp.ne.s32.totalorder %s164, %s166
      %p170 = scmp.eq.s32.totalorder %s41, 0
      %p171 = por %p169, %p170
      %p172 = scmp.ne.s32.totalorder %s164, %s166
      %p173 = scmp.eq.s32.totalorder %s46, 1
      %p174 = por %p172, %p173
      %p175 = scmp.ne.s32.totalorder %s166, %s167
      %p176 = scmp.eq.s32.totalorder %s46, 0
      %p177 = por %p175, %p176
      %p178 = scmp.ne.s32.totalorder %s166, %s167
      %p179 = scmp.eq.s32.totalorder %s47, 1
      %p180 = por %p178, %p179
      %p182 = scmp.ne.s32.totalorder %s167, %s181
      %p183 = scmp.eq.s32.totalorder %s47, 0
      %p184 = por %p182, %p183
      %s186 = sadd.s32 %s185, 1
      %p189 = scmp.eq.s32.totalorder %s41, 1
      %p190 = scmp.ne.s32.totalorder %s185, %s187
      %p191 = scmp.eq.s32.totalorder %s41, 0
      %p192 = por %p190, %p191
      %p193 = scmp.ne.s32.totalorder %s185, %s187
      %p194 = scmp.eq.s32.totalorder %s46, 1
      %p195 = por %p193, %p194
      %p196 = scmp.ne.s32.totalorder %s187, %s188
      %p197 = scmp.eq.s32.totalorder %s46, 0
      %p198 = por %p196, %p197
      %p199 = scmp.ne.s32.totalorder %s187, %s188
      %p200 = scmp.eq.s32.totalorder %s47, 1
      %p201 = por %p199, %p200
      %p203 = scmp.ne.s32.totalorder %s188, %s202
      %p204 = scmp.eq.s32.totalorder %s47, 0
      %p205 = por %p203, %p204
      %s207 = sadd.s32 %s206, 1
      %p210 = scmp.eq.s32.totalorder %s41, 1
      %p211 = scmp.ne.s32.totalorder %s206, %s208
      %p212 = scmp.eq.s32.totalorder %s41, 0
      %p213 = por %p211, %p212
      %p214 = scmp.ne.s32.totalorder %s206, %s208
      %p215 = scmp.eq.s32.totalorder %s46, 1
      %p216 = por %p214, %p215
      %p217 = scmp.ne.s32.totalorder %s208, %s209
      %p218 = scmp.eq.s32.totalorder %s46, 0
      %p219 = por %p217, %p218
      %p220 = scmp.ne.s32.totalorder %s208, %s209
      %p221 = scmp.eq.s32.totalorder %s47, 1
      %p222 = por %p220, %p221
      %p224 = scmp.ne.s32.totalorder %s209, %s223
      %p225 = scmp.eq.s32.totalorder %s47, 0
      %p226 = por %p224, %p225
      %s228 = sadd.s32 %s227, 1
      %p231 = scmp.eq.s32.totalorder %s41, 1
      %p232 = scmp.ne.s32.totalorder %s227, %s229
      %p233 = scmp.eq.s32.totalorder %s41, 0
      %p234 = por %p232, %p233
      %p235 = scmp.ne.s32.totalorder %s227, %s229
      %p236 = scmp.eq.s32.totalorder %s46, 1
      %p237 = por %p235, %p236
      %p238 = scmp.ne.s32.totalorder %s229, %s230
      %p239 = scmp.eq.s32.totalorder %s46, 0
      %p240 = por %p238, %p239
      %p241 = scmp.ne.s32.totalorder %s229, %s230
      %p242 = scmp.eq.s32.totalorder %s47, 1
      %p243 = por %p241, %p242
      %p245 = scmp.ne.s32.totalorder %s230, %s244
      %p246 = scmp.eq.s32.totalorder %s47, 0
      %p247 = por %p245, %p246
      %s249 = sadd.s32 %s248, 1
      %p252 = scmp.eq.s32.totalorder %s41, 1
      %p253 = scmp.ne.s32.totalorder %s248, %s250
      %p254 = scmp.eq.s32.totalorder %s41, 0
      %p255 = por %p253, %p254
      %p256 = scmp.ne.s32.totalorder %s248, %s250
      %p257 = scmp.eq.s32.totalorder %s46, 1
      %p258 = por %p256, %p257
      %p259 = scmp.ne.s32.totalorder %s250, %s251
      %p260 = scmp.eq.s32.totalorder %s46, 0
      %p261 = por %p259, %p260
      %p262 = scmp.ne.s32.totalorder %s250, %s251
      %p263 = scmp.eq.s32.totalorder %s47, 1
      %p264 = por %p262, %p263
      %p266 = scmp.ne.s32.totalorder %s251, %s265
      %p267 = scmp.eq.s32.totalorder %s47, 0
      %p268 = por %p266, %p267
      %s270 = sadd.s32 %s269, 1
      %p273 = scmp.eq.s32.totalorder %s41, 1
      %p274 = scmp.ne.s32.totalorder %s269, %s271
      %p275 = scmp.eq.s32.totalorder %s41, 0
      %p276 = por %p274, %p275
      %p277 = scmp.ne.s32.totalorder %s269, %s271
      %p278 = scmp.eq.s32.totalorder %s46, 1
      %p279 = por %p277, %p278
      %p280 = scmp.ne.s32.totalorder %s271, %s272
      %p281 = scmp.eq.s32.totalorder %s46, 0
      %p282 = por %p280, %p281
      %p283 = scmp.ne.s32.totalorder %s271, %s272
      %p284 = scmp.eq.s32.totalorder %s47, 1
      %p285 = por %p283, %p284
      %p287 = scmp.ne.s32.totalorder %s272, %s286
      %p288 = scmp.eq.s32.totalorder %s47, 0
      %p289 = por %p287, %p288
      %s291 = sadd.s32 %s290, 1
      %p294 = scmp.eq.s32.totalorder %s41, 1
      %p295 = scmp.ne.s32.totalorder %s290, %s292
      %p296 = scmp.eq.s32.totalorder %s41, 0
      %p297 = por %p295, %p296
      %p298 = scmp.ne.s32.totalorder %s290, %s292
      %p299 = scmp.eq.s32.totalorder %s46, 1
      %p300 = por %p298, %p299
      %p301 = scmp.ne.s32.totalorder %s292, %s293
      %p302 = scmp.eq.s32.totalorder %s46, 0
      %p303 = por %p301, %p302
      %p304 = scmp.ne.s32.totalorder %s292, %s293
      %p305 = scmp.eq.s32.totalorder %s47, 1
      %p306 = por %p304, %p305
      %p308 = scmp.ne.s32.totalorder %s293, %s307
      %p309 = scmp.eq.s32.totalorder %s47, 0
      %p310 = por %p308, %p309
      %s312 = sadd.s32 %s311, 1
      %p315 = scmp.eq.s32.totalorder %s41, 1
      %p316 = scmp.ne.s32.totalorder %s311, %s313
      %p317 = scmp.eq.s32.totalorder %s41, 0
      %p318 = por %p316, %p317
      %p319 = scmp.ne.s32.totalorder %s311, %s313
      %p320 = scmp.eq.s32.totalorder %s46, 1
      %p321 = por %p319, %p320
      %p322 = scmp.ne.s32.totalorder %s313, %s314
      %p323 = scmp.eq.s32.totalorder %s46, 0
      %p324 = por %p322, %p323
      %p325 = scmp.ne.s32.totalorder %s313, %s314
      %p326 = scmp.eq.s32.totalorder %s47, 1
      %p327 = por %p325, %p326
      %p329 = scmp.ne.s32.totalorder %s314, %s328
      %p330 = scmp.eq.s32.totalorder %s47, 0
      %p331 = por %p329, %p330
      %s333 = sadd.s32 %s332, 1
      %p336 = scmp.eq.s32.totalorder %s41, 1
      %p337 = scmp.ne.s32.totalorder %s332, %s334
      %p338 = scmp.eq.s32.totalorder %s41, 0
      %p339 = por %p337, %p338
      %p340 = scmp.ne.s32.totalorder %s332, %s334
      %p341 = scmp.eq.s32.totalorder %s46, 1
      %p342 = por %p340, %p341
      %p343 = scmp.ne.s32.totalorder %s334, %s335
      %p344 = scmp.eq.s32.totalorder %s46, 0
      %p345 = por %p343, %p344
      %p346 = scmp.ne.s32.totalorder %s334, %s335
      %p347 = scmp.eq.s32.totalorder %s47, 1
      %p348 = por %p346, %p347
      %p350 = scmp.ne.s32.totalorder %s335, %s349
      %p351 = scmp.eq.s32.totalorder %s47, 0
      %p352 = por %p350, %p351
      %s354 = sadd.s32 %s353, 1
      %p357 = scmp.eq.s32.totalorder %s41, 1
      %p358 = scmp.ne.s32.totalorder %s353, %s355
      %p359 = scmp.eq.s32.totalorder %s41, 0
      %p360 = por %p358, %p359
      %p361 = scmp.ne.s32.totalorder %s353, %s355
      %p362 = scmp.eq.s32.totalorder %s46, 1
      %p363 = por %p361, %p362
      %p364 = scmp.ne.s32.totalorder %s355, %s356
      %p365 = scmp.eq.s32.totalorder %s46, 0
      %p366 = por %p364, %p365
      %p367 = scmp.ne.s32.totalorder %s355, %s356
      %p368 = scmp.eq.s32.totalorder %s47, 1
      %p369 = por %p367, %p368
      %p371 = scmp.ne.s32.totalorder %s356, %s370
      %p372 = scmp.eq.s32.totalorder %s47, 0
      %p373 = por %p371, %p372
      %s375 = sadd.s32 %s374, 1
      %p378 = scmp.eq.s32.totalorder %s41, 1
      %p379 = scmp.ne.s32.totalorder %s374, %s376
      %p380 = scmp.eq.s32.totalorder %s41, 0
      %p381 = por %p379, %p380
      %p382 = scmp.ne.s32.totalorder %s374, %s376
      %p383 = scmp.eq.s32.totalorder %s46, 1
      %p384 = por %p382, %p383
      %p385 = scmp.ne.s32.totalorder %s376, %s377
      %p386 = scmp.eq.s32.totalorder %s46, 0
      %p387 = por %p385, %p386
      %p388 = scmp.ne.s32.totalorder %s376, %s377
      %p389 = scmp.eq.s32.totalorder %s47, 1
      %p390 = por %p388, %p389
      %p392 = scmp.ne.s32.totalorder %s377, %s391
      %p393 = scmp.eq.s32.totalorder %s47, 0
      %p394 = por %p392, %p393
      %s396 = sadd.s32 %s395, 1
      %p399 = scmp.eq.s32.totalorder %s41, 1
      %p400 = scmp.ne.s32.totalorder %s395, %s397
      %p401 = scmp.eq.s32.totalorder %s41, 0
      %p402 = por %p400, %p401
      %p403 = scmp.ne.s32.totalorder %s395, %s397
      %p404 = scmp.eq.s32.totalorder %s46, 1
      %p405 = por %p403, %p404
      %p406 = scmp.ne.s32.totalorder %s397, %s398
      %p407 = scmp.eq.s32.totalorder %s46, 0
      %p408 = por %p406, %p407
      %p409 = scmp.ne.s32.totalorder %s397, %s398
      %p410 = scmp.eq.s32.totalorder %s47, 1
      %p411 = por %p409, %p410
      %p413 = scmp.ne.s32.totalorder %s398, %s412
      %p414 = scmp.eq.s32.totalorder %s47, 0
      %p415 = por %p413, %p414
      %s417 = sadd.s32 %s416, 1
      %p420 = scmp.eq.s32.totalorder %s41, 1
      %p421 = scmp.ne.s32.totalorder %s416, %s418
      %p422 = scmp.eq.s32.totalorder %s41, 0
      %p423 = por %p421, %p422
      %p424 = scmp.ne.s32.totalorder %s416, %s418
      %p425 = scmp.eq.s32.totalorder %s46, 1
      %p426 = por %p424, %p425
      %p427 = scmp.ne.s32.totalorder %s418, %s419
      %p428 = scmp.eq.s32.totalorder %s46, 0
      %p429 = por %p427, %p428
      %p430 = scmp.ne.s32.totalorder %s418, %s419
      %p431 = scmp.eq.s32.totalorder %s47, 1
      %p432 = por %p430, %p431
      %p434 = scmp.ne.s32.totalorder %s419, %s433
      %p435 = scmp.eq.s32.totalorder %s47, 0
      %p436 = por %p434, %p435
      %s437 = ssub.s32 %s41, %s48
      %p438 = scmp.eq.s32.totalorder %s437, 0
      %s440 = sadd.s32 %s439, 1
      %s441 = scalar_select %p438, %s439, %s440
      %p444 = pneg %p438
      %p445 = scmp.eq.s32.totalorder %s41, 1
      %p446 = por %p444, %p445
      %p447 = scmp.ne.s32.totalorder %s439, %s442
      %p448 = scmp.eq.s32.totalorder %s41, 0
      %p449 = por %p447, %p448
      %p450 = scmp.ne.s32.totalorder %s439, %s442
      %p451 = scmp.eq.s32.totalorder %s46, 1
      %p452 = por %p450, %p451
      %p453 = scmp.ne.s32.totalorder %s442, %s443
      %p454 = scmp.eq.s32.totalorder %s46, 0
      %p455 = por %p453, %p454
      %p456 = scmp.ne.s32.totalorder %s442, %s443
      %p457 = scmp.eq.s32.totalorder %s47, 1
      %p458 = por %p456, %p457
      %p460 = scmp.ne.s32.totalorder %s443, %s459
      %p461 = scmp.eq.s32.totalorder %s47, 0
      %p462 = por %p460, %p461
      %p463 = scmp.le.s32.totalorder 1, %s41
      %p464 = scmp.lt.s32.totalorder %s41, 3
      %p465 = pnand %p463, %p464
      %p466 = pneg %p465
      // Predicated region
      $region9: #{tpu_custom_call.1} parent=5 // pred_check
        _
      $region10: #{tpu_custom_call.1} parent=5 // pred_check_branch
        %468 = sbr.rel (%p465) target = $region12
      $region11: #{tpu_custom_call.1} parent=5 // pred_region
        %s469 = ssub.s32 %s41, 1
        // Predicated region
        $region13: #{tpu_custom_call.1} parent=11 // pred_check
          %p470 = pneg %p114
        $region14: #{tpu_custom_call.1} parent=11 // pred_check_branch
          %472 = sbr.rel (%p470) target = $region16
        $region15: #{tpu_custom_call.1} parent=11 // pred_region
          _
        $region16: #{tpu_custom_call.1} parent=11 // pred_fallthru
          _
        // Predicated region
        $region17: #{tpu_custom_call.1} parent=11 // pred_check
          %p473 = pneg %p135
        $region18: #{tpu_custom_call.1} parent=11 // pred_check_branch
          %475 = sbr.rel (%p473) target = $region20
        $region19: #{tpu_custom_call.1} parent=11 // pred_region
          %477 = vsyncadd [#allocation5], 0
          %s479 = sshll.u32 %s4, 4
          %s480 = int_to_ptr.hbm [resolvable:$true] %s479
          %s481 = sshll.u32 [#allocation4], 4
          %s482 = int_to_ptr.vmem [resolvable:$true] %s481
          %484 = dma.hbm_to_vmem [thread:$0]  %s480, 16, %s482, [#allocation5]
        $region20: #{tpu_custom_call.1} parent=11 // pred_fallthru
          _
        // Predicated region
        $region21: #{tpu_custom_call.1} parent=11 // pred_check
          %p485 = pneg %p156
        $region22: #{tpu_custom_call.1} parent=11 // pred_check_branch
          %487 = sbr.rel (%p485) target = $region24
        $region23: #{tpu_custom_call.1} parent=11 // pred_region
          _
        $region24: #{tpu_custom_call.1} parent=11 // pred_fallthru
          _
        // Predicated region
        $region25: #{tpu_custom_call.1} parent=11 // pred_check
          %p488 = pneg %p177
        $region26: #{tpu_custom_call.1} parent=11 // pred_check_branch
          %490 = sbr.rel (%p488) target = $region28
        $region27: #{tpu_custom_call.1} parent=11 // pred_region
          %492 = vsyncadd [#allocation8], 0
          %s494 = sshll.u32 %s6, 4
          %s495 = int_to_ptr.hbm [resolvable:$true] %s494
          %s496 = sshll.u32 [#allocation7], 4
          %s497 = int_to_ptr.vmem [resolvable:$true] %s496
          %499 = dma.hbm_to_vmem [thread:$0]  %s495, 16, %s497, [#allocation8]
        $region28: #{tpu_custom_call.1} parent=11 // pred_fallthru
          _
        // Predicated region
        $region29: #{tpu_custom_call.1} parent=11 // pred_check
          %p500 = pneg %p198
        $region30: #{tpu_custom_call.1} parent=11 // pred_check_branch
          %502 = sbr.rel (%p500) target = $region32
        $region31: #{tpu_custom_call.1} parent=11 // pred_region
          _
        $region32: #{tpu_custom_call.1} parent=11 // pred_fallthru
          _
        // Predicated region
        $region33: #{tpu_custom_call.1} parent=11 // pred_check
          %p503 = pneg %p219
        $region34: #{tpu_custom_call.1} parent=11 // pred_check_branch
          %505 = sbr.rel (%p503) target = $region36
        $region35: #{tpu_custom_call.1} parent=11 // pred_region
          %507 = vsyncadd [#allocation8], 0
          %s509 = sshll.u32 %s8, 4
          %s510 = int_to_ptr.hbm [resolvable:$true] %s509
          %s511 = sshll.u32 [#allocation9], 4
          %s512 = int_to_ptr.vmem [resolvable:$true] %s511
          %514 = dma.hbm_to_vmem [thread:$0]  %s510, 16, %s512, [#allocation8]
        $region36: #{tpu_custom_call.1} parent=11 // pred_fallthru
          _
        // Predicated region
        $region37: #{tpu_custom_call.1} parent=11 // pred_check
          %p515 = pneg %p240
        $region38: #{tpu_custom_call.1} parent=11 // pred_check_branch
          %517 = sbr.rel (%p515) target = $region40
        $region39: #{tpu_custom_call.1} parent=11 // pred_region
          _
        $region40: #{tpu_custom_call.1} parent=11 // pred_fallthru
          _
        // Predicated region
        $region41: #{tpu_custom_call.1} parent=11 // pred_check
          %p518 = pneg %p261
        $region42: #{tpu_custom_call.1} parent=11 // pred_check_branch
          %520 = sbr.rel (%p518) target = $region44
        $region43: #{tpu_custom_call.1} parent=11 // pred_region
          %522 = vsyncadd [#allocation11], 0
          %s524 = sshll.u32 %s10, 4
          %s525 = int_to_ptr.hbm [resolvable:$true] %s524
          %s526 = sshll.u32 [#allocation10], 4
          %s527 = int_to_ptr.vmem [resolvable:$true] %s526
          %529 = dma.hbm_to_vmem [thread:$0]  %s525, 16, %s527, [#allocation11]
        $region44: #{tpu_custom_call.1} parent=11 // pred_fallthru
          _
        // Predicated region
        $region45: #{tpu_custom_call.1} parent=11 // pred_check
          %p530 = pneg %p282
        $region46: #{tpu_custom_call.1} parent=11 // pred_check_branch
          %532 = sbr.rel (%p530) target = $region48
        $region47: #{tpu_custom_call.1} parent=11 // pred_region
          %534 = vsyncadd [#allocation11], 0
          %s535 = sshll.u32 %s11, 4
          %s536 = int_to_ptr.hbm [resolvable:$true] %s535
          %s537 = sshll.u32 [#allocation12], 4
          %s538 = int_to_ptr.vmem [resolvable:$true] %s537
          %543 = dma.hbm_to_vmem [thread:$0]  %s536, 256, %s538, [#allocation11], 64, 64, 4
        $region48: #{tpu_custom_call.1} parent=11 // pred_fallthru
          _
        // Predicated region
        $region49: #{tpu_custom_call.1} parent=11 // pred_check
          %p544 = pneg %p303
        $region50: #{tpu_custom_call.1} parent=11 // pred_check_branch
          %546 = sbr.rel (%p544) target = $region52
        $region51: #{tpu_custom_call.1} parent=11 // pred_region
          %548 = vsyncadd [#allocation14], 0
          %s550 = sshll.u32 %s12, 4
          %s551 = int_to_ptr.hbm [resolvable:$true] %s550
          %s552 = sshll.u32 [#allocation13], 4
          %s553 = int_to_ptr.vmem [resolvable:$true] %s552
          %555 = dma.hbm_to_vmem [thread:$0]  %s551, 16, %s553, [#allocation14]
        $region52: #{tpu_custom_call.1} parent=11 // pred_fallthru
          _
        // Predicated region
        $region53: #{tpu_custom_call.1} parent=11 // pred_check
          %p556 = pneg %p324
        $region54: #{tpu_custom_call.1} parent=11 // pred_check_branch
          %558 = sbr.rel (%p556) target = $region56
        $region55: #{tpu_custom_call.1} parent=11 // pred_region
          %560 = vsyncadd [#allocation14], 0
          %s562 = sshll.u32 %s13, 4
          %s563 = int_to_ptr.hbm [resolvable:$true] %s562
          %s564 = sshll.u32 [#allocation15], 4
          %s565 = int_to_ptr.vmem [resolvable:$true] %s564
          %567 = dma.hbm_to_vmem [thread:$0]  %s563, 64, %s565, [#allocation14]
        $region56: #{tpu_custom_call.1} parent=11 // pred_fallthru
          _
        // Predicated region
        $region57: #{tpu_custom_call.1} parent=11 // pred_check
          %p568 = pneg %p345
        $region58: #{tpu_custom_call.1} parent=11 // pred_check_branch
          %570 = sbr.rel (%p568) target = $region60
        $region59: #{tpu_custom_call.1} parent=11 // pred_region
          %572 = vsyncadd [#allocation17], 0
          %s574 = sshll.u32 %s14, 4
          %s575 = int_to_ptr.hbm [resolvable:$true] %s574
          %s576 = sshll.u32 [#allocation16], 4
          %s577 = int_to_ptr.vmem [resolvable:$true] %s576
          %579 = dma.hbm_to_vmem [thread:$0]  %s575, 64, %s577, [#allocation17]
        $region60: #{tpu_custom_call.1} parent=11 // pred_fallthru
          _
        // Predicated region
        $region61: #{tpu_custom_call.1} parent=11 // pred_check
          %p580 = pneg %p366
        $region62: #{tpu_custom_call.1} parent=11 // pred_check_branch
          %582 = sbr.rel (%p580) target = $region64
        $region63: #{tpu_custom_call.1} parent=11 // pred_region
          _
        $region64: #{tpu_custom_call.1} parent=11 // pred_fallthru
          _
        // Predicated region
        $region65: #{tpu_custom_call.1} parent=11 // pred_check
          %p583 = pneg %p387
        $region66: #{tpu_custom_call.1} parent=11 // pred_check_branch
          %585 = sbr.rel (%p583) target = $region68
        $region67: #{tpu_custom_call.1} parent=11 // pred_region
          _
        $region68: #{tpu_custom_call.1} parent=11 // pred_fallthru
          _
        // Predicated region
        $region69: #{tpu_custom_call.1} parent=11 // pred_check
          %p586 = pneg %p408
        $region70: #{tpu_custom_call.1} parent=11 // pred_check_branch
          %588 = sbr.rel (%p586) target = $region72
        $region71: #{tpu_custom_call.1} parent=11 // pred_region
          _
        $region72: #{tpu_custom_call.1} parent=11 // pred_fallthru
          _
        // Predicated region
        $region73: #{tpu_custom_call.1} parent=11 // pred_check
          %p589 = pneg %p429
        $region74: #{tpu_custom_call.1} parent=11 // pred_check_branch
          %591 = sbr.rel (%p589) target = $region76
        $region75: #{tpu_custom_call.1} parent=11 // pred_region
          _
        $region76: #{tpu_custom_call.1} parent=11 // pred_fallthru
          _
      $region12: #{tpu_custom_call.1} parent=5 // pred_fallthru
        _
      %p592 = scmp.lt.s32.totalorder %s41, 2
      // Predicated region
      $region77: #{tpu_custom_call.1} parent=5 // pred_check
        %p593 = pneg %p592
      $region78: #{tpu_custom_call.1} parent=5 // pred_check_branch
        %595 = sbr.rel (%p593) target = $region80
      $region79: #{tpu_custom_call.1} parent=5 // pred_region
        // Predicated region
        $region81: #{tpu_custom_call.1} parent=79 // pred_check
          %p596 = pneg %p61
        $region82: #{tpu_custom_call.1} parent=79 // pred_check_branch
          %598 = sbr.rel (%p596) target = $region84
        $region83: #{tpu_custom_call.1} parent=79 // pred_region
          %p599 = scmp.lt.s32.totalorder %s41, 1
          %s600 = scalar_select %p599, %s41, 1
          %s601 = smul.addr %s600, 8
          %s602 = scalar_lea.vmem %s1, %s601
        $region84: #{tpu_custom_call.1} parent=79 // pred_fallthru
          _
        // Predicated region
        $region85: #{tpu_custom_call.1} parent=79 // pred_check
          %p603 = pneg %p87
        $region86: #{tpu_custom_call.1} parent=79 // pred_check_branch
          %605 = sbr.rel (%p603) target = $region88
        $region87: #{tpu_custom_call.1} parent=79 // pred_region
          %p606 = scmp.lt.s32.totalorder %s41, 1
          %s607 = scalar_select %p606, %s41, 1
          %s608 = smul.addr %s607, 2
          %s609 = smul.addr %s608, 8
          %s610 = scalar_lea.vmem %s2, %s609
        $region88: #{tpu_custom_call.1} parent=79 // pred_fallthru
          _
      $region80: #{tpu_custom_call.1} parent=5 // pred_fallthru
        _
      %p611 = scmp.le.s32.totalorder 1, %s41
      %p612 = scmp.lt.s32.totalorder %s41, 3
      %p613 = pnand %p611, %p612
      %p614 = pneg %p613
      // Predicated region
      $region89: #{tpu_custom_call.1} parent=5 // pred_check
        _
      $region90: #{tpu_custom_call.1} parent=5 // pred_check_branch
        %616 = sbr.rel (%p613) target = $region92
      $region91: #{tpu_custom_call.1} parent=5 // pred_region
        %s617 = ssub.s32 %s41, 1
        // Predicated region
        $region93: #{tpu_custom_call.1} parent=91 // pred_check
          %p618 = pneg %p135
        $region94: #{tpu_custom_call.1} parent=91 // pred_check_branch
          %620 = sbr.rel (%p618) target = $region96
        $region95: #{tpu_custom_call.1} parent=91 // pred_region
          %622 = dma.done [#allocation5], 16
        $region96: #{tpu_custom_call.1} parent=91 // pred_fallthru
          _
        // Predicated region
        $region97: #{tpu_custom_call.1} parent=91 // pred_check
          %p623 = pneg %p177
        $region98: #{tpu_custom_call.1} parent=91 // pred_check_branch
          %625 = sbr.rel (%p623) target = $region100
        $region99: #{tpu_custom_call.1} parent=91 // pred_region
          %627 = dma.done [#allocation8], 16
        $region100: #{tpu_custom_call.1} parent=91 // pred_fallthru
          _
        // Predicated region
        $region101: #{tpu_custom_call.1} parent=91 // pred_check
          %p628 = pneg %p219
        $region102: #{tpu_custom_call.1} parent=91 // pred_check_branch
          %630 = sbr.rel (%p628) target = $region104
        $region103: #{tpu_custom_call.1} parent=91 // pred_region
          %632 = dma.done [#allocation8], 16
        $region104: #{tpu_custom_call.1} parent=91 // pred_fallthru
          _
        // Predicated region
        $region105: #{tpu_custom_call.1} parent=91 // pred_check
          %p633 = pneg %p261
        $region106: #{tpu_custom_call.1} parent=91 // pred_check_branch
          %635 = sbr.rel (%p633) target = $region108
        $region107: #{tpu_custom_call.1} parent=91 // pred_region
          %637 = dma.done [#allocation11], 16
        $region108: #{tpu_custom_call.1} parent=91 // pred_fallthru
          _
        // Predicated region
        $region109: #{tpu_custom_call.1} parent=91 // pred_check
          %p638 = pneg %p282
        $region110: #{tpu_custom_call.1} parent=91 // pred_check_branch
          %640 = sbr.rel (%p638) target = $region112
        $region111: #{tpu_custom_call.1} parent=91 // pred_region
          %642 = dma.done [#allocation11], 256
        $region112: #{tpu_custom_call.1} parent=91 // pred_fallthru
          _
        // Predicated region
        $region113: #{tpu_custom_call.1} parent=91 // pred_check
          %p643 = pneg %p303
        $region114: #{tpu_custom_call.1} parent=91 // pred_check_branch
          %645 = sbr.rel (%p643) target = $region116
        $region115: #{tpu_custom_call.1} parent=91 // pred_region
          %647 = dma.done [#allocation14], 16
        $region116: #{tpu_custom_call.1} parent=91 // pred_fallthru
          _
        // Predicated region
        $region117: #{tpu_custom_call.1} parent=91 // pred_check
          %p648 = pneg %p324
        $region118: #{tpu_custom_call.1} parent=91 // pred_check_branch
          %650 = sbr.rel (%p648) target = $region120
        $region119: #{tpu_custom_call.1} parent=91 // pred_region
          %652 = dma.done [#allocation14], 64
        $region120: #{tpu_custom_call.1} parent=91 // pred_fallthru
          _
        // Predicated region
        $region121: #{tpu_custom_call.1} parent=91 // pred_check
          %p653 = pneg %p345
        $region122: #{tpu_custom_call.1} parent=91 // pred_check_branch
          %655 = sbr.rel (%p653) target = $region124
        $region123: #{tpu_custom_call.1} parent=91 // pred_region
          %657 = dma.done [#allocation17], 64
        $region124: #{tpu_custom_call.1} parent=91 // pred_fallthru
          _
        %p658 = scmp.lt.s32.totalorder %s46, 1
        %s659 = scalar_select %p658, %s46, 1
        %s660 = smul.addr %s659, 8
        %s661 = scalar_lea.vmem %s1, %s660
        %p662 = pneg %p67
        %p663 = pneg %p64
        %p664 = scmp.lt.s32.totalorder %s46, 1
        %s665 = scalar_select %p664, %s46, 1
        %s666 = smul.addr %s665, 2
        %s667 = smul.addr %s666, 8
        %s668 = scalar_lea.vmem %s2, %s667
        %p669 = pneg %p93
        %p670 = pneg %p90
        %p671 = pneg %p114
        %p672 = pneg %p111
        %p673 = pneg %p135
        %p674 = pneg %p132
        %p675 = pneg %p156
        %p676 = pneg %p153
        %p677 = pneg %p177
        %p678 = pneg %p174
        %p679 = pneg %p198
        %p680 = pneg %p195
        %p681 = pneg %p219
        %p682 = pneg %p216
        %p683 = pneg %p240
        %p684 = pneg %p237
        %p685 = pneg %p261
        %p686 = pneg %p258
        %p687 = pneg %p282
        %p688 = pneg %p279
        %p689 = pneg %p303
        %p690 = pneg %p300
        %p691 = pneg %p324
        %p692 = pneg %p321
        %p693 = pneg %p345
        %p694 = pneg %p342
        %p695 = pneg %p366
        %p696 = pneg %p363
        %p697 = pneg %p387
        %p698 = pneg %p384
        %p699 = pneg %p408
        %p700 = pneg %p405
        %p701 = pneg %p429
        %p702 = pneg %p426
        %p703 = pneg %p455
        %p704 = pneg %p452
        %s705 = sand.u32 %s442, 1
        %s706 = scalar_lea.sflag [#allocation6], %s705
        %s707 = sand.u32 %s442, 1
        %s708 = smul.addr %s707, 8
        %s709 = scalar_lea.vmem [#allocation18], %s708
        %p710 = scmp.lt.s32.totalorder %s46, 1
        %s711 = scalar_select %p710, %s46, 1
        %s712 = smul.addr %s711, 8
        %s713 = scalar_lea.vmem %s1, %s712
        %p714 = scmp.lt.s32.totalorder %s46, 1
        %s715 = scalar_select %p714, %s46, 1
        %s716 = smul.addr %s715, 2
        %s717 = smul.addr %s716, 8
        %s718 = scalar_lea.vmem %s2, %s717
        %v720 = vld [vmem:[%s713] sm:$0xff]
        %v721 = vld [vmem:[%s718] sm:$0xff]
        %v722 = vld [vmem:[%s718 + $0x8] sm:$0x3]
        %v723 = vlaneseq
        %v724 = vshrl.u32 %v723, 7
        %v725 = vlaneseq
        %v726 = vand.u32 %v725, 127
        %vm727 = vcmp.ge.s32.totalorder %v724, %v726
        %v728 = vsel %vm727, 0.0, -1e+30
        %s729 = sld [smem:[#allocation3 + %s46]]
        %v730 = vstv %s729
        %vm731 = vcmp.lt.s32.totalorder %v726, %v730
        %v732 = vsel %vm731, 0.0, -1e+30
        %v733 = vld [vmem:[#allocation15] sm:$0x1]
        %v734 = vld [vmem:[#allocation16] sm:$0x1]
        %vm735 = vcmask 261120
        %v736 = vsel %vm735, %v720, 0.0
        %737 = vadd.xlane.f32.xlu0 %v736
        %v738 = vpop.xlane.xlu0 %737
        %v739 = vrcp.pop 32.0
        %v740 = vmul.f32 32.0, %v739
        %v741 = vsub.f32 1.0, %v740
        %v742 = vmul.f32 %v739, %v741
        %v743 = vadd.f32 %v739, %v742
        %vm744 = vweird.f32 %v739
        %v745 = vsel %vm744, %v739, %v743
        %v746 = vmul.f32 %v738, %v745
        %v747 = vsub.f32 %v720, %v746
        %v748 = vmul.f32 %v747, %v747
        %v749 = vsel %vm735, %v748, 0.0
        %750 = vadd.xlane.f32.xlu0 %v749
        %v751 = vpop.xlane.xlu0 %750
        %v752 = vmul.f32 %v751, %v745
        %v753 = vadd.f32 %v752, 1e-06
        %v754 = vrsqrt.pop %v753
        %v755 = vmul.f32 %v754, %v753
        %v756 = vmul.f32 %v755, %v754
        %v757 = vmul.f32 0.5, %v756
        %v758 = vsub.f32 1.5, %v757
        %v759 = vmul.f32 %v754, %v758
        %vm760 = vweird.f32 %v753
        %vm761 = vweird.f32 %v754
        %vm762 = vmor %vm760, %vm761
        %v763 = vsel %vm762, %v754, %v759
        %v764 = vmul.f32 %v747, %v763
        %v765 = vperm.slane %v733, 0
        %v766 = vmul.f32 %v764, %v765
        %v767 = vperm.slane %v734, 0
        %v768 = vadd.f32 %v766, %v767
        %v769 = vpack.c.bf16 %v768, %v768
        %v770 = vld [vmem:[%s3] sm:$0xf]
        %v771 = vld [vmem:[%s3 + $0x4] sm:$0xf]
        %v772 = vld [vmem:[%s3 + $0x8] sm:$0xf]
        %v773 = vld [vmem:[%s3 + $0xc] sm:$0xf]
        %v774 = vld [vmem:[#allocation4] sm:$0x1]
        %v776 = vperm.slane %v774, 0
        %v782 = vunpack.c.l.b16 %v770
        %v783 = vunpack.c.l.b16 %v771
        %v784 = vunpack.c.l.b16 %v772
        %v785 = vunpack.c.l.b16 %v773
        %v786 = vpack.c.b16 %v783, %v782
        %v787 = vpack.c.b16 %v785, %v784
        %v791 = vsel %vm735, %v769, 0
        %793 = vmatpush.bf16.msra.mxu0 0
        %794 = vmatpush.bf16.msra.mxu0 0
        %795 = vmatpush.bf16.msra.mxu0 0
        %796 = vmatpush.bf16.msra.mxu0 0
        %797 = vmatpush.bf16.msra.mxu0 0
        %798 = vmatpush.bf16.msra.mxu0 0
        %799 = vmatpush.bf16.msra.mxu0 %v787
        %800 = vmatpush.bf16.msra.mxu0 %v786
        %801 = vmatmul.bf16.gmra.mxu0 %v791
        %v802 = vpop.f32.mrf.mxu0
        %v803 = vadd.f32 %v776, %v802
        %v804 = vpop.f32.mrf.mxu0
        %805 = vdwg.mxu0
        %807 = vrot.lane.b32.xlu0 %v803, 120
        %v808 = vpop.permute.xlu0 %807
        %810 = vrot.lane.b32.xlu0 %v803, 112
        %v811 = vpop.permute.xlu0 %810
        %813 = vrot.lane.b32.xlu0 %v803, 104
        %v814 = vpop.permute.xlu0 %813
        %v816 = vpack.c.bf16 %v803, %v803
        %v817 = vpack.c.bf16 %v808, %v808
        %v818 = vpack.c.bf16 %v811, %v811
        %v819 = vpack.c.bf16 %v814, %v814
        %v821 = vunpack.c.l.b16 %v816
        %v822 = vpack.c.b16 %v821, %v821
        %823 = vrot.lane.b32.xlu0 %v822, 96
        %v824 = vpop.permute.xlu0 %823
        %vm825 = vcmask 64512
        %v827 = vsel %vm825, %v816, 0
        %v830 = vsel %vm825, %v824, 0
        %832 = vmatpush.bf16.xpose.msra.mxu0 0
        %833 = vmatpush.bf16.xpose.msra.mxu0 0
        %834 = vmatpush.bf16.xpose.msra.mxu0 0
        %835 = vmatpush.bf16.xpose.msra.mxu0 0
        %836 = vmatpush.bf16.xpose.msra.mxu0 0
        %837 = vmatpush.bf16.xpose.msra.mxu0 0
        %838 = vmatpush.bf16.xpose.msra.mxu0 0
        %839 = vmatpush.bf16.xpose.msra.mxu0 %v830
        %840 = vmatmul.bf16.gmra.mxu0 %v827
        %v841 = vpop.f32.mrf.mxu0
        %v842 = vadd.f32 %v728, %v841
        %v843 = vpop.f32.mrf.mxu0
        %844 = vdwg.mxu0
        %v846 = vunpack.c.l.b16 %v817
        %v847 = vpack.c.b16 %v846, %v846
        %848 = vrot.lane.b32.xlu0 %v847, 96
        %v849 = vpop.permute.xlu0 %848
        %v851 = vsel %vm825, %v817, 0
        %v854 = vsel %vm825, %v849, 0
        %856 = vmatpush.bf16.xpose.msra.mxu0 0
        %857 = vmatpush.bf16.xpose.msra.mxu0 0
        %858 = vmatpush.bf16.xpose.msra.mxu0 0
        %859 = vmatpush.bf16.xpose.msra.mxu0 0
        %860 = vmatpush.bf16.xpose.msra.mxu0 0
        %861 = vmatpush.bf16.xpose.msra.mxu0 0
        %862 = vmatpush.bf16.xpose.msra.mxu0 0
        %863 = vmatpush.bf16.xpose.msra.mxu0 %v854
        %864 = vmatmul.bf16.gmra.mxu0 %v851
        %v865 = vpop.f32.mrf.mxu0
        %v866 = vadd.f32 %v728, %v865
        %v867 = vpop.f32.mrf.mxu0
        %868 = vdwg.mxu0
        %v870 = vunpack.c.l.b16 %v818
        %v871 = vpack.c.b16 %v870, %v870
        %872 = vrot.lane.b32.xlu0 %v871, 96
        %v873 = vpop.permute.xlu0 %872
        %v875 = vsel %vm825, %v818, 0
        %v878 = vsel %vm825, %v873, 0
        %880 = vmatpush.bf16.xpose.msra.mxu0 0
        %881 = vmatpush.bf16.xpose.msra.mxu0 0
        %882 = vmatpush.bf16.xpose.msra.mxu0 0
        %883 = vmatpush.bf16.xpose.msra.mxu0 0
        %884 = vmatpush.bf16.xpose.msra.mxu0 0
        %885 = vmatpush.bf16.xpose.msra.mxu0 0
        %886 = vmatpush.bf16.xpose.msra.mxu0 0
        %887 = vmatpush.bf16.xpose.msra.mxu0 %v878
        %888 = vmatmul.bf16.gmra.mxu0 %v875
        %v889 = vpop.f32.mrf.mxu0
        %v890 = vadd.f32 %v728, %v889
        %v891 = vpop.f32.mrf.mxu0
        %892 = vdwg.mxu0
        %v894 = vunpack.c.l.b16 %v819
        %v895 = vpack.c.b16 %v894, %v894
        %896 = vrot.lane.b32.xlu0 %v895, 96
        %v897 = vpop.permute.xlu0 %896
        %v899 = vsel %vm825, %v819, 0
        %v902 = vsel %vm825, %v897, 0
        %904 = vmatpush.bf16.xpose.msra.mxu0 0
        %905 = vmatpush.bf16.xpose.msra.mxu0 0
        %906 = vmatpush.bf16.xpose.msra.mxu0 0
        %907 = vmatpush.bf16.xpose.msra.mxu0 0
        %908 = vmatpush.bf16.xpose.msra.mxu0 0
        %909 = vmatpush.bf16.xpose.msra.mxu0 0
        %910 = vmatpush.bf16.xpose.msra.mxu0 0
        %911 = vmatpush.bf16.xpose.msra.mxu0 %v902
        %912 = vmatmul.bf16.gmra.mxu0 %v899
        %v913 = vpop.f32.mrf.mxu0
        %v914 = vadd.f32 %v728, %v913
        %v915 = vpop.f32.mrf.mxu0
        %916 = vdwg.mxu0
        %v917 = vsel %vm825, %v842, -inf
        %918 = vmax.xlane.f32.xlu0 %v917
        %v919 = vpop.xlane.xlu0 %918
        %v920 = vsel %vm825, %v866, -inf
        %921 = vmax.xlane.f32.xlu0 %v920
        %v922 = vpop.xlane.xlu0 %921
        %v923 = vsel %vm825, %v890, -inf
        %924 = vmax.xlane.f32.xlu0 %v923
        %v925 = vpop.xlane.xlu0 %924
        %v926 = vsel %vm825, %v914, -inf
        %927 = vmax.xlane.f32.xlu0 %v926
        %v928 = vpop.xlane.xlu0 %927
        %v929 = vsub.f32 %v842, %v919
        %v930 = vsub.f32 %v866, %v922
        %v931 = vsub.f32 %v890, %v925
        %v932 = vsub.f32 %v914, %v928
        %v933 = vmul.f32 %v929, 1.442695
        %v934 = vpow.pop %v933
        %v935 = vmul.f32 %v930, 1.442695
        %v936 = vpow.pop %v935
        %v937 = vmul.f32 %v931, 1.442695
        %v938 = vpow.pop %v937
        %v939 = vmul.f32 %v932, 1.442695
        %v940 = vpow.pop %v939
        %v941 = vsel %vm825, %v934, 0.0
        %942 = vadd.xlane.f32.xlu0 %v941
        %v943 = vpop.xlane.xlu0 %942
        %v944 = vsel %vm825, %v936, 0.0
        %945 = vadd.xlane.f32.xlu0 %v944
        %v946 = vpop.xlane.xlu0 %945
        %v947 = vsel %vm825, %v938, 0.0
        %948 = vadd.xlane.f32.xlu0 %v947
        %v949 = vpop.xlane.xlu0 %948
        %v950 = vsel %vm825, %v940, 0.0
        %951 = vadd.xlane.f32.xlu0 %v950
        %v952 = vpop.xlane.xlu0 %951
        %v953 = vrcp.pop %v943
        %v954 = vrcp.pop %v946
        %v955 = vrcp.pop %v949
        %v956 = vrcp.pop %v952
        %v957 = vmul.f32 %v934, %v953
        %v958 = vmul.f32 %v936, %v954
        %v959 = vmul.f32 %v938, %v955
        %v960 = vmul.f32 %v940, %v956
        %v961 = vpack.c.bf16 %v957, %v957
        %v962 = vpack.c.bf16 %v958, %v958
        %v963 = vpack.c.bf16 %v959, %v959
        %v964 = vpack.c.bf16 %v960, %v960
        %965 = vrot.lane.b32.xlu0 %v822, 64
        %v966 = vpop.permute.xlu0 %965
        %v968 = vsel %vm825, %v961, 0
        %vm970 = vcmask 1043456
        %v972 = vsel %vm970, %v966, 0
        %974 = vmatpush.bf16.msra.mxu0 0
        %975 = vmatpush.bf16.msra.mxu0 0
        %976 = vmatpush.bf16.msra.mxu0 0
        %977 = vmatpush.bf16.msra.mxu0 0
        %978 = vmatpush.bf16.msra.mxu0 0
        %979 = vmatpush.bf16.msra.mxu0 0
        %980 = vmatpush.bf16.msra.mxu0 0
        %981 = vmatpush.bf16.msra.mxu0 %v972
        %982 = vmatmul.bf16.gmra.mxu0 %v968
        %v983 = vpop.f32.mrf.mxu0
        %v984 = vadd.f32 0.0, %v983
        %v985 = vpop.f32.mrf.mxu0
        %986 = vdwg.mxu0
        %987 = vrot.lane.b32.xlu0 %v847, 64
        %v988 = vpop.permute.xlu0 %987
        %v990 = vsel %vm825, %v962, 0
        %v993 = vsel %vm970, %v988, 0
        %995 = vmatpush.bf16.msra.mxu0 0
        %996 = vmatpush.bf16.msra.mxu0 0
        %997 = vmatpush.bf16.msra.mxu0 0
        %998 = vmatpush.bf16.msra.mxu0 0
        %999 = vmatpush.bf16.msra.mxu0 0
        %1000 = vmatpush.bf16.msra.mxu0 0
        %1001 = vmatpush.bf16.msra.mxu0 0
        %1002 = vmatpush.bf16.msra.mxu0 %v993
        %1003 = vmatmul.bf16.gmra.mxu0 %v990
        %v1004 = vpop.f32.mrf.mxu0
        %v1005 = vadd.f32 0.0, %v1004
        %v1006 = vpop.f32.mrf.mxu0
        %1007 = vdwg.mxu0
        %1008 = vrot.lane.b32.xlu0 %v871, 64
        %v1009 = vpop.permute.xlu0 %1008
        %v1011 = vsel %vm825, %v963, 0
        %v1014 = vsel %vm970, %v1009, 0
        %1016 = vmatpush.bf16.msra.mxu0 0
        %1017 = vmatpush.bf16.msra.mxu0 0
        %1018 = vmatpush.bf16.msra.mxu0 0
        %1019 = vmatpush.bf16.msra.mxu0 0
        %1020 = vmatpush.bf16.msra.mxu0 0
        %1021 = vmatpush.bf16.msra.mxu0 0
        %1022 = vmatpush.bf16.msra.mxu0 0
        %1023 = vmatpush.bf16.msra.mxu0 %v1014
        %1024 = vmatmul.bf16.gmra.mxu0 %v1011
        %v1025 = vpop.f32.mrf.mxu0
        %v1026 = vadd.f32 0.0, %v1025
        %v1027 = vpop.f32.mrf.mxu0
        %1028 = vdwg.mxu0
        %1029 = vrot.lane.b32.xlu0 %v895, 64
        %v1030 = vpop.permute.xlu0 %1029
        %v1032 = vsel %vm825, %v964, 0
        %v1035 = vsel %vm970, %v1030, 0
        %1037 = vmatpush.bf16.msra.mxu0 0
        %1038 = vmatpush.bf16.msra.mxu0 0
        %1039 = vmatpush.bf16.msra.mxu0 0
        %1040 = vmatpush.bf16.msra.mxu0 0
        %1041 = vmatpush.bf16.msra.mxu0 0
        %1042 = vmatpush.bf16.msra.mxu0 0
        %1043 = vmatpush.bf16.msra.mxu0 0
        %1044 = vmatpush.bf16.msra.mxu0 %v1035
        %1045 = vmatmul.bf16.gmra.mxu0 %v1032
        %v1046 = vpop.f32.mrf.mxu0
        %v1047 = vadd.f32 0.0, %v1046
        %v1048 = vpop.f32.mrf.mxu0
        %1049 = vdwg.mxu0
        %1051 = vrot.lane.b32.xlu0 %v1005, 8
        %v1052 = vpop.permute.xlu0 %1051
        %1055 = vrot.lane.b32.xlu0 %v1026, 16
        %v1056 = vpop.permute.xlu0 %1055
        %1059 = vrot.lane.b32.xlu0 %v1047, 24
        %v1060 = vpop.permute.xlu0 %1059
        %v1062 = vsel %vm825, %v984, %v1052
        %vm1063 = vcmask 130048
        %v1064 = vsel %vm1063, %v1062, %v1056
        %vm1065 = vcmask 195584
        %v1066 = vsel %vm1065, %v1064, %v1060
        %v1067 = vpack.c.bf16 %v1066, %v1066
        %v1068 = vld [vmem:[%s5] sm:$0xf]
        %v1069 = vld [vmem:[%s5 + $0x4] sm:$0xf]
        %v1070 = vld [vmem:[%s5 + $0x8] sm:$0xf]
        %v1071 = vld [vmem:[%s5 + $0xc] sm:$0xf]
        %v1072 = vld [vmem:[#allocation7] sm:$0x1]
        %v1074 = vperm.slane %v1072, 0
        %v1080 = vunpack.c.l.b16 %v1068
        %v1081 = vunpack.c.l.b16 %v1069
        %v1082 = vunpack.c.l.b16 %v1070
        %v1083 = vunpack.c.l.b16 %v1071
        %v1084 = vpack.c.b16 %v1081, %v1080
        %v1085 = vpack.c.b16 %v1083, %v1082
        %v1089 = vsel %vm735, %v1067, 0
        %1091 = vmatpush.bf16.msra.mxu0 0
        %1092 = vmatpush.bf16.msra.mxu0 0
        %1093 = vmatpush.bf16.msra.mxu0 0
        %1094 = vmatpush.bf16.msra.mxu0 0
        %1095 = vmatpush.bf16.msra.mxu0 0
        %1096 = vmatpush.bf16.msra.mxu0 0
        %1097 = vmatpush.bf16.msra.mxu0 %v1085
        %1098 = vmatpush.bf16.msra.mxu0 %v1084
        %1099 = vmatmul.bf16.gmra.mxu0 %v1089
        %v1100 = vpop.f32.mrf.mxu0
        %v1101 = vadd.f32 %v1074, %v1100
        %v1102 = vpop.f32.mrf.mxu0
        %1103 = vdwg.mxu0
        %v1104 = vadd.f32 %v1101, %v720
        %v1105 = vld [vmem:[#allocation15 + $0x1] sm:$0x1]
        %v1106 = vld [vmem:[#allocation16 + $0x1] sm:$0x1]
        %v1107 = vsel %vm735, %v1104, 0.0
        %1108 = vadd.xlane.f32.xlu0 %v1107
        %v1109 = vpop.xlane.xlu0 %1108
        %v1110 = vmul.f32 %v1109, %v745
        %v1111 = vsub.f32 %v1104, %v1110
        %v1112 = vmul.f32 %v1111, %v1111
        %v1113 = vsel %vm735, %v1112, 0.0
        %1114 = vadd.xlane.f32.xlu0 %v1113
        %v1115 = vpop.xlane.xlu0 %1114
        %v1116 = vmul.f32 %v1115, %v745
        %v1117 = vadd.f32 %v1116, 1e-06
        %v1118 = vrsqrt.pop %v1117
        %v1119 = vmul.f32 %v1118, %v1117
        %v1120 = vmul.f32 %v1119, %v1118
        %v1121 = vmul.f32 0.5, %v1120
        %v1122 = vsub.f32 1.5, %v1121
        %v1123 = vmul.f32 %v1118, %v1122
        %vm1124 = vweird.f32 %v1117
        %vm1125 = vweird.f32 %v1118
        %vm1126 = vmor %vm1124, %vm1125
        %v1127 = vsel %vm1126, %v1118, %v1123
        %v1128 = vmul.f32 %v1111, %v1127
        %v1129 = vperm.slane %v1105, 0
        %v1130 = vmul.f32 %v1128, %v1129
        %v1131 = vperm.slane %v1106, 0
        %v1132 = vadd.f32 %v1130, %v1131
        %v1133 = vpack.c.bf16 %v1132, %v1132
        %v1134 = vld [vmem:[%s7] sm:$0xf]
        %v1135 = vld [vmem:[%s7 + $0x4] sm:$0xf]
        %v1136 = vld [vmem:[%s7 + $0x8] sm:$0xf]
        %v1137 = vld [vmem:[%s7 + $0xc] sm:$0xf]
        %v1138 = vld [vmem:[#allocation9] sm:$0x1]
        %v1140 = vperm.slane %v1138, 0
        %v1146 = vunpack.c.l.b16 %v1134
        %v1147 = vunpack.c.l.b16 %v1135
        %v1148 = vunpack.c.l.b16 %v1136
        %v1149 = vunpack.c.l.b16 %v1137
        %v1150 = vpack.c.b16 %v1147, %v1146
        %v1151 = vpack.c.b16 %v1149, %v1148
        %v1155 = vsel %vm735, %v1133, 0
        %1157 = vmatpush.bf16.msra.mxu0 0
        %1158 = vmatpush.bf16.msra.mxu0 0
        %1159 = vmatpush.bf16.msra.mxu0 0
        %1160 = vmatpush.bf16.msra.mxu0 0
        %1161 = vmatpush.bf16.msra.mxu0 0
        %1162 = vmatpush.bf16.msra.mxu0 0
        %1163 = vmatpush.bf16.msra.mxu0 %v1151
        %1164 = vmatpush.bf16.msra.mxu0 %v1150
        %1165 = vmatmul.bf16.gmra.mxu0 %v1155
        %v1166 = vpop.f32.mrf.mxu0
        %v1167 = vadd.f32 %v1140, %v1166
        %v1168 = vpop.f32.mrf.mxu0
        %1169 = vdwg.mxu0
        %1171 = vrot.lane.b32.xlu0 %v1167, 120
        %v1172 = vpop.permute.xlu0 %1171
        %1174 = vrot.lane.b32.xlu0 %v1167, 112
        %v1175 = vpop.permute.xlu0 %1174
        %1177 = vrot.lane.b32.xlu0 %v1167, 104
        %v1178 = vpop.permute.xlu0 %1177
        %v1180 = vpack.c.bf16 %v722, %v721
        %v1181 = vld [vmem:[%s9] sm:$0xf]
        %v1182 = vld [vmem:[%s9 + $0x4] sm:$0xf]
        %v1183 = vld [vmem:[%s9 + $0x8] sm:$0xf]
        %v1184 = vld [vmem:[%s9 + $0xc] sm:$0xf]
        %v1185 = vld [vmem:[#allocation10] sm:$0x1]
        %v1187 = vperm.slane %v1185, 0
        %v1193 = vunpack.c.l.b16 %v1181
        %v1194 = vunpack.c.l.b16 %v1182
        %v1195 = vunpack.c.l.b16 %v1183
        %v1196 = vunpack.c.l.b16 %v1184
        %v1197 = vpack.c.b16 %v1194, %v1193
        %v1198 = vpack.c.b16 %v1196, %v1195
        %v1202 = vsel %vm735, %v1180, 0
        %1204 = vmatpush.bf16.msra.mxu0 0
        %1205 = vmatpush.bf16.msra.mxu0 0
        %1206 = vmatpush.bf16.msra.mxu0 0
        %1207 = vmatpush.bf16.msra.mxu0 0
        %1208 = vmatpush.bf16.msra.mxu0 0
        %1209 = vmatpush.bf16.msra.mxu0 0
        %1210 = vmatpush.bf16.msra.mxu0 %v1198
        %1211 = vmatpush.bf16.msra.mxu0 %v1197
        %1212 = vmatmul.bf16.gmra.mxu0 %v1202
        %v1213 = vpop.f32.mrf.mxu0
        %v1214 = vadd.f32 %v1187, %v1213
        %v1215 = vpop.f32.mrf.mxu0
        %v1216 = vadd.f32 %v1187, %v1215
        %1217 = vdwg.mxu0
        %1220 = vrot.lane.b32.xlu0 %v1214, 120
        %v1221 = vpop.permute.xlu0 %1220
        %1222 = vrot.lane.b32.xlu0 %v1216, 120
        %v1223 = vpop.permute.xlu0 %1222
        %1226 = vrot.lane.b32.xlu0 %v1214, 112
        %v1227 = vpop.permute.xlu0 %1226
        %1228 = vrot.lane.b32.xlu0 %v1216, 112
        %v1229 = vpop.permute.xlu0 %1228
        %1232 = vrot.lane.b32.xlu0 %v1214, 104
        %v1233 = vpop.permute.xlu0 %1232
        %1234 = vrot.lane.b32.xlu0 %v1216, 104
        %v1235 = vpop.permute.xlu0 %1234
        %v1238 = vpack.c.bf16 %v1167, %v1167
        %v1239 = vpack.c.bf16 %v1172, %v1172
        %v1240 = vpack.c.bf16 %v1175, %v1175
        %v1241 = vpack.c.bf16 %v1178, %v1178
        %v1242 = vpack.c.bf16 %v1214, %v1214
        %v1243 = vpack.c.bf16 %v1216, %v1216
        %v1244 = vpack.c.bf16 %v1221, %v1221
        %v1245 = vpack.c.bf16 %v1223, %v1223
        %v1246 = vpack.c.bf16 %v1227, %v1227
        %v1247 = vpack.c.bf16 %v1229, %v1229
        %v1248 = vpack.c.bf16 %v1233, %v1233
        %v1249 = vpack.c.bf16 %v1235, %v1235
        %v1252 = vunpack.c.l.b16 %v1242
        %v1253 = vunpack.c.l.b16 %v1243
        %v1254 = vpack.c.b16 %v1253, %v1252
        %v1256 = vsel %vm825, %v1238, 0
        %v1259 = vsel %vm825, %v1254, 0
        %1261 = vmatpush.bf16.xpose.msra.mxu0 0
        %1262 = vmatpush.bf16.xpose.msra.mxu0 0
        %1263 = vmatpush.bf16.xpose.msra.mxu0 0
        %1264 = vmatpush.bf16.xpose.msra.mxu0 0
        %1265 = vmatpush.bf16.xpose.msra.mxu0 0
        %1266 = vmatpush.bf16.xpose.msra.mxu0 0
        %1267 = vmatpush.bf16.xpose.msra.mxu0 0
        %1268 = vmatpush.bf16.xpose.msra.mxu0 %v1259
        %1269 = vmatmul.bf16.gmra.mxu0 %v1256
        %v1270 = vpop.f32.mrf.mxu0
        %v1271 = vadd.f32 %v732, %v1270
        %v1272 = vpop.f32.mrf.mxu0
        %1273 = vdwg.mxu0
        %v1276 = vunpack.c.l.b16 %v1244
        %v1277 = vunpack.c.l.b16 %v1245
        %v1278 = vpack.c.b16 %v1277, %v1276
        %v1280 = vsel %vm825, %v1239, 0
        %v1283 = vsel %vm825, %v1278, 0
        %1285 = vmatpush.bf16.xpose.msra.mxu0 0
        %1286 = vmatpush.bf16.xpose.msra.mxu0 0
        %1287 = vmatpush.bf16.xpose.msra.mxu0 0
        %1288 = vmatpush.bf16.xpose.msra.mxu0 0
        %1289 = vmatpush.bf16.xpose.msra.mxu0 0
        %1290 = vmatpush.bf16.xpose.msra.mxu0 0
        %1291 = vmatpush.bf16.xpose.msra.mxu0 0
        %1292 = vmatpush.bf16.xpose.msra.mxu0 %v1283
        %1293 = vmatmul.bf16.gmra.mxu0 %v1280
        %v1294 = vpop.f32.mrf.mxu0
        %v1295 = vadd.f32 %v732, %v1294
        %v1296 = vpop.f32.mrf.mxu0
        %1297 = vdwg.mxu0
        %v1300 = vunpack.c.l.b16 %v1246
        %v1301 = vunpack.c.l.b16 %v1247
        %v1302 = vpack.c.b16 %v1301, %v1300
        %v1304 = vsel %vm825, %v1240, 0
        %v1307 = vsel %vm825, %v1302, 0
        %1309 = vmatpush.bf16.xpose.msra.mxu0 0
        %1310 = vmatpush.bf16.xpose.msra.mxu0 0
        %1311 = vmatpush.bf16.xpose.msra.mxu0 0
        %1312 = vmatpush.bf16.xpose.msra.mxu0 0
        %1313 = vmatpush.bf16.xpose.msra.mxu0 0
        %1314 = vmatpush.bf16.xpose.msra.mxu0 0
        %1315 = vmatpush.bf16.xpose.msra.mxu0 0
        %1316 = vmatpush.bf16.xpose.msra.mxu0 %v1307
        %1317 = vmatmul.bf16.gmra.mxu0 %v1304
        %v1318 = vpop.f32.mrf.mxu0
        %v1319 = vadd.f32 %v732, %v1318
        %v1320 = vpop.f32.mrf.mxu0
        %1321 = vdwg.mxu0
        %v1324 = vunpack.c.l.b16 %v1248
        %v1325 = vunpack.c.l.b16 %v1249
        %v1326 = vpack.c.b16 %v1325, %v1324
        %v1328 = vsel %vm825, %v1241, 0
        %v1331 = vsel %vm825, %v1326, 0
        %1333 = vmatpush.bf16.xpose.msra.mxu0 0
        %1334 = vmatpush.bf16.xpose.msra.mxu0 0
        %1335 = vmatpush.bf16.xpose.msra.mxu0 0
        %1336 = vmatpush.bf16.xpose.msra.mxu0 0
        %1337 = vmatpush.bf16.xpose.msra.mxu0 0
        %1338 = vmatpush.bf16.xpose.msra.mxu0 0
        %1339 = vmatpush.bf16.xpose.msra.mxu0 0
        %1340 = vmatpush.bf16.xpose.msra.mxu0 %v1331
        %1341 = vmatmul.bf16.gmra.mxu0 %v1328
        %v1342 = vpop.f32.mrf.mxu0
        %v1343 = vadd.f32 %v732, %v1342
        %v1344 = vpop.f32.mrf.mxu0
        %1345 = vdwg.mxu0
        %vm1346 = vcmask 80896
        %v1347 = vsel %vm1346, %v1271, -inf
        %1348 = vmax.xlane.f32.xlu0 %v1347
        %v1349 = vpop.xlane.xlu0 %1348
        %v1350 = vsel %vm1346, %v1295, -inf
        %1351 = vmax.xlane.f32.xlu0 %v1350
        %v1352 = vpop.xlane.xlu0 %1351
        %v1353 = vsel %vm1346, %v1319, -inf
        %1354 = vmax.xlane.f32.xlu0 %v1353
        %v1355 = vpop.xlane.xlu0 %1354
        %v1356 = vsel %vm1346, %v1343, -inf
        %1357 = vmax.xlane.f32.xlu0 %v1356
        %v1358 = vpop.xlane.xlu0 %1357
        %v1359 = vsub.f32 %v1271, %v1349
        %v1360 = vsub.f32 %v1295, %v1352
        %v1361 = vsub.f32 %v1319, %v1355
        %v1362 = vsub.f32 %v1343, %v1358
        %v1363 = vmul.f32 %v1359, 1.442695
        %v1364 = vpow.pop %v1363
        %v1365 = vmul.f32 %v1360, 1.442695
        %v1366 = vpow.pop %v1365
        %v1367 = vmul.f32 %v1361, 1.442695
        %v1368 = vpow.pop %v1367
        %v1369 = vmul.f32 %v1362, 1.442695
        %v1370 = vpow.pop %v1369
        %v1371 = vsel %vm1346, %v1364, 0.0
        %1372 = vadd.xlane.f32.xlu0 %v1371
        %v1373 = vpop.xlane.xlu0 %1372
        %v1374 = vsel %vm1346, %v1366, 0.0
        %1375 = vadd.xlane.f32.xlu0 %v1374
        %v1376 = vpop.xlane.xlu0 %1375
        %v1377 = vsel %vm1346, %v1368, 0.0
        %1378 = vadd.xlane.f32.xlu0 %v1377
        %v1379 = vpop.xlane.xlu0 %1378
        %v1380 = vsel %vm1346, %v1370, 0.0
        %1381 = vadd.xlane.f32.xlu0 %v1380
        %v1382 = vpop.xlane.xlu0 %1381
        %v1383 = vrcp.pop %v1373
        %v1384 = vrcp.pop %v1376
        %v1385 = vrcp.pop %v1379
        %v1386 = vrcp.pop %v1382
        %v1387 = vmul.f32 %v1364, %v1383
        %v1388 = vmul.f32 %v1366, %v1384
        %v1389 = vmul.f32 %v1368, %v1385
        %v1390 = vmul.f32 %v1370, %v1386
        %v1391 = vpack.c.bf16 %v1387, %v1387
        %v1392 = vpack.c.bf16 %v1388, %v1388
        %v1393 = vpack.c.bf16 %v1389, %v1389
        %v1394 = vpack.c.bf16 %v1390, %v1390
        %1395 = vrot.lane.b32.xlu0 %v1254, 96
        %v1396 = vpop.permute.xlu0 %1395
        %v1398 = vsel %vm1346, %v1391, 0
        %vm1400 = vcmask 1044480
        %v1402 = vsel %vm1400, %v1396, 0
        %1404 = vmatpush.bf16.msra.mxu0 0
        %1405 = vmatpush.bf16.msra.mxu0 0
        %1406 = vmatpush.bf16.msra.mxu0 0
        %1407 = vmatpush.bf16.msra.mxu0 0
        %1408 = vmatpush.bf16.msra.mxu0 0
        %1409 = vmatpush.bf16.msra.mxu0 0
        %1410 = vmatpush.bf16.msra.mxu0 0
        %1411 = vmatpush.bf16.msra.mxu0 %v1402
        %1412 = vmatmul.bf16.gmra.mxu0 %v1398
        %v1413 = vpop.f32.mrf.mxu0
        %v1414 = vadd.f32 0.0, %v1413
        %v1415 = vpop.f32.mrf.mxu0
        %1416 = vdwg.mxu0
        %1417 = vrot.lane.b32.xlu0 %v1278, 96
        %v1418 = vpop.permute.xlu0 %1417
        %v1420 = vsel %vm1346, %v1392, 0
        %v1423 = vsel %vm1400, %v1418, 0
        %1425 = vmatpush.bf16.msra.mxu0 0
        %1426 = vmatpush.bf16.msra.mxu0 0
        %1427 = vmatpush.bf16.msra.mxu0 0
        %1428 = vmatpush.bf16.msra.mxu0 0
        %1429 = vmatpush.bf16.msra.mxu0 0
        %1430 = vmatpush.bf16.msra.mxu0 0
        %1431 = vmatpush.bf16.msra.mxu0 0
        %1432 = vmatpush.bf16.msra.mxu0 %v1423
        %1433 = vmatmul.bf16.gmra.mxu0 %v1420
        %v1434 = vpop.f32.mrf.mxu0
        %v1435 = vadd.f32 0.0, %v1434
        %v1436 = vpop.f32.mrf.mxu0
        %1437 = vdwg.mxu0
        %1438 = vrot.lane.b32.xlu0 %v1302, 96
        %v1439 = vpop.permute.xlu0 %1438
        %v1441 = vsel %vm1346, %v1393, 0
        %v1444 = vsel %vm1400, %v1439, 0
        %1446 = vmatpush.bf16.msra.mxu0 0
        %1447 = vmatpush.bf16.msra.mxu0 0
        %1448 = vmatpush.bf16.msra.mxu0 0
        %1449 = vmatpush.bf16.msra.mxu0 0
        %1450 = vmatpush.bf16.msra.mxu0 0
        %1451 = vmatpush.bf16.msra.mxu0 0
        %1452 = vmatpush.bf16.msra.mxu0 0
        %1453 = vmatpush.bf16.msra.mxu0 %v1444
        %1454 = vmatmul.bf16.gmra.mxu0 %v1441
        %v1455 = vpop.f32.mrf.mxu0
        %v1456 = vadd.f32 0.0, %v1455
        %v1457 = vpop.f32.mrf.mxu0
        %1458 = vdwg.mxu0
        %1459 = vrot.lane.b32.xlu0 %v1326, 96
        %v1460 = vpop.permute.xlu0 %1459
        %v1462 = vsel %vm1346, %v1394, 0
        %v1465 = vsel %vm1400, %v1460, 0
        %1467 = vmatpush.bf16.msra.mxu0 0
        %1468 = vmatpush.bf16.msra.mxu0 0
        %1469 = vmatpush.bf16.msra.mxu0 0
        %1470 = vmatpush.bf16.msra.mxu0 0
        %1471 = vmatpush.bf16.msra.mxu0 0
        %1472 = vmatpush.bf16.msra.mxu0 0
        %1473 = vmatpush.bf16.msra.mxu0 0
        %1474 = vmatpush.bf16.msra.mxu0 %v1465
        %1475 = vmatmul.bf16.gmra.mxu0 %v1462
        %v1476 = vpop.f32.mrf.mxu0
        %v1477 = vadd.f32 0.0, %v1476
        %v1478 = vpop.f32.mrf.mxu0
        %1479 = vdwg.mxu0
        %1481 = vrot.lane.b32.xlu0 %v1435, 8
        %v1482 = vpop.permute.xlu0 %1481
        %1485 = vrot.lane.b32.xlu0 %v1456, 16
        %v1486 = vpop.permute.xlu0 %1485
        %1489 = vrot.lane.b32.xlu0 %v1477, 24
        %v1490 = vpop.permute.xlu0 %1489
        %v1492 = vsel %vm825, %v1414, %v1482
        %v1493 = vsel %vm1063, %v1492, %v1486
        %v1494 = vsel %vm1065, %v1493, %v1490
        %v1495 = vpack.c.bf16 %v1494, %v1494
        %v1496 = vld [vmem:[#allocation12] sm:$0xf]
        %v1497 = vld [vmem:[#allocation12 + $0x4] sm:$0xf]
        %v1498 = vld [vmem:[#allocation12 + $0x8] sm:$0xf]
        %v1499 = vld [vmem:[#allocation12 + $0xc] sm:$0xf]
        %v1500 = vld [vmem:[#allocation13] sm:$0x1]
        %v1502 = vperm.slane %v1500, 0
        %v1508 = vunpack.c.l.b16 %v1496
        %v1509 = vunpack.c.l.b16 %v1497
        %v1510 = vunpack.c.l.b16 %v1498
        %v1511 = vunpack.c.l.b16 %v1499
        %v1512 = vpack.c.b16 %v1509, %v1508
        %v1513 = vpack.c.b16 %v1511, %v1510
        %v1517 = vsel %vm735, %v1495, 0
        %1519 = vmatpush.bf16.msra.mxu0 0
        %1520 = vmatpush.bf16.msra.mxu0 0
        %1521 = vmatpush.bf16.msra.mxu0 0
        %1522 = vmatpush.bf16.msra.mxu0 0
        %1523 = vmatpush.bf16.msra.mxu0 0
        %1524 = vmatpush.bf16.msra.mxu0 0
        %1525 = vmatpush.bf16.msra.mxu0 %v1513
        %1526 = vmatpush.bf16.msra.mxu0 %v1512
        %1527 = vmatmul.bf16.gmra.mxu0 %v1517
        %v1528 = vpop.f32.mrf.mxu0
        %v1529 = vadd.f32 %v1502, %v1528
        %v1530 = vpop.f32.mrf.mxu0
        %1531 = vdwg.mxu0
        %v1532 = vadd.f32 %v1529, %v1104
        %v1533 = vld [vmem:[#allocation15 + $0x2] sm:$0x1]
        %v1534 = vld [vmem:[#allocation16 + $0x2] sm:$0x1]
        %v1535 = vsel %vm735, %v1532, 0.0
        %1536 = vadd.xlane.f32.xlu0 %v1535
        %v1537 = vpop.xlane.xlu0 %1536
        %v1538 = vmul.f32 %v1537, %v745
        %v1539 = vsub.f32 %v1532, %v1538
        %v1540 = vmul.f32 %v1539, %v1539
        %v1541 = vsel %vm735, %v1540, 0.0
        %1542 = vadd.xlane.f32.xlu0 %v1541
        %v1543 = vpop.xlane.xlu0 %1542
        %v1544 = vmul.f32 %v1543, %v745
        %v1545 = vadd.f32 %v1544, 1e-06
        %v1546 = vrsqrt.pop %v1545
        %v1547 = vmul.f32 %v1546, %v1545
        %v1548 = vmul.f32 %v1547, %v1546
        %v1549 = vmul.f32 0.5, %v1548
        %v1550 = vsub.f32 1.5, %v1549
        %v1551 = vmul.f32 %v1546, %v1550
        %vm1552 = vweird.f32 %v1545
        %vm1553 = vweird.f32 %v1546
        %vm1554 = vmor %vm1552, %vm1553
        %v1555 = vsel %vm1554, %v1546, %v1551
        %v1556 = vmul.f32 %v1539, %v1555
        %v1557 = vperm.slane %v1533, 0
        %v1558 = vmul.f32 %v1556, %v1557
        %v1559 = vperm.slane %v1534, 0
        %v1560 = vadd.f32 %v1558, %v1559
        %v1561 = vpack.c.bf16 %v1560, %v1560
        %v1562 = vld [vmem:[%s15] sm:$0xf]
        %v1563 = vld [vmem:[%s15 + $0x4] sm:$0xf]
        %v1564 = vld [vmem:[%s15 + $0x8] sm:$0xf]
        %v1565 = vld [vmem:[%s15 + $0xc] sm:$0xf]
        %v1566 = vld [vmem:[%s16] sm:$0x1]
        %v1568 = vperm.slane %v1566, 0
        %v1574 = vunpack.c.l.b16 %v1562
        %v1575 = vunpack.c.l.b16 %v1563
        %v1576 = vunpack.c.l.b16 %v1564
        %v1577 = vunpack.c.l.b16 %v1565
        %v1578 = vpack.c.b16 %v1575, %v1574
        %v1579 = vpack.c.b16 %v1577, %v1576
        %v1583 = vsel %vm735, %v1561, 0
        %1585 = vmatpush.bf16.msra.mxu0 0
        %1586 = vmatpush.bf16.msra.mxu0 0
        %1587 = vmatpush.bf16.msra.mxu0 0
        %1588 = vmatpush.bf16.msra.mxu0 0
        %1589 = vmatpush.bf16.msra.mxu0 0
        %1590 = vmatpush.bf16.msra.mxu0 0
        %1591 = vmatpush.bf16.msra.mxu0 %v1579
        %1592 = vmatpush.bf16.msra.mxu0 %v1578
        %1593 = vmatmul.bf16.gmra.mxu0 %v1583
        %v1594 = vpop.f32.mrf.mxu0
        %v1595 = vadd.f32 %v1568, %v1594
        %v1596 = vpop.f32.mrf.mxu0
        %1597 = vdwg.mxu0
        %v1598 = vmax.f32 %v1595, 0.0
        %v1599 = vpack.c.bf16 %v1598, %v1598
        %v1600 = vld [vmem:[%s17] sm:$0xf]
        %v1601 = vld [vmem:[%s17 + $0x4] sm:$0xf]
        %v1602 = vld [vmem:[%s17 + $0x8] sm:$0xf]
        %v1603 = vld [vmem:[%s17 + $0xc] sm:$0xf]
        %v1604 = vld [vmem:[%s17 + $0x10] sm:$0xf]
        %v1605 = vld [vmem:[%s17 + $0x14] sm:$0xf]
        %v1606 = vld [vmem:[%s17 + $0x18] sm:$0xf]
        %v1607 = vld [vmem:[%s17 + $0x1c] sm:$0xf]
        %v1608 = vld [vmem:[%s18] sm:$0x1]
        %v1610 = vperm.slane %v1608, 0
        %v1620 = vunpack.c.l.b16 %v1600
        %v1621 = vunpack.c.l.b16 %v1601
        %v1622 = vunpack.c.l.b16 %v1602
        %v1623 = vunpack.c.l.b16 %v1603
        %v1624 = vunpack.c.l.b16 %v1604
        %v1625 = vunpack.c.l.b16 %v1605
        %v1626 = vunpack.c.l.b16 %v1606
        %v1627 = vunpack.c.l.b16 %v1607
        %v1628 = vpack.c.b16 %v1621, %v1620
        %v1629 = vpack.c.b16 %v1623, %v1622
        %v1630 = vpack.c.b16 %v1625, %v1624
        %v1631 = vpack.c.b16 %v1627, %v1626
        %vm1636 = vcmask 523264
        %v1638 = vsel %vm1636, %v1599, 0
        %1640 = vmatpush.bf16.msra.mxu0 0
        %1641 = vmatpush.bf16.msra.mxu0 0
        %1642 = vmatpush.bf16.msra.mxu0 0
        %1643 = vmatpush.bf16.msra.mxu0 0
        %1644 = vmatpush.bf16.msra.mxu0 %v1631
        %1645 = vmatpush.bf16.msra.mxu0 %v1630
        %1646 = vmatpush.bf16.msra.mxu0 %v1629
        %1647 = vmatpush.bf16.msra.mxu0 %v1628
        %1648 = vmatmul.bf16.gmra.mxu0 %v1638
        %v1649 = vpop.f32.mrf.mxu0
        %v1650 = vadd.f32 %v1610, %v1649
        %v1651 = vpop.f32.mrf.mxu0
        %1652 = vdwg.mxu0
        %v1653 = vadd.f32 %v1650, %v1532
        %1654 = vst.msk [vmem:[%s709] sm:$0xff] %vm735, %v1653
        %s1655 = sand.u32 %s442, 1
        %s1656 = scalar_lea.sflag [#allocation6], %s1655
        %s1657 = sand.u32 %s442, 1
        %s1658 = smul.addr %s1657, 8
        %s1659 = scalar_lea.vmem [#allocation18], %s1658
        // Predicated region
        $region125: #{tpu_custom_call.1} parent=91 // pred_check
          %p1660 = pneg %p452
        $region126: #{tpu_custom_call.1} parent=91 // pred_check_branch
          %1662 = sbr.rel (%p1660) target = $region128
        $region127: #{tpu_custom_call.1} parent=91 // pred_region
          %1664 = vsyncadd %s1656, 0
          %s1665 = smul.addr %s46, 8
          %s1666 = scalar_lea.hbm %s19, %s1665
          %s1668 = sshll.u32 %s1659, 4
          %s1669 = int_to_ptr.vmem [resolvable:$true] %s1668
          %s1670 = sshll.u32 %s1666, 4
          %s1671 = int_to_ptr.hbm [resolvable:$true] %s1670
          %1673 = dma.vmem_to_hbm [thread:$0]  %s1669, 128, %s1671, %s1656
        $region128: #{tpu_custom_call.1} parent=91 // pred_fallthru
          _
      $region92: #{tpu_custom_call.1} parent=5 // pred_fallthru
        _
      %p1674 = scmp.le.s32.totalorder 2, %s41
      // Predicated region
      $region129: #{tpu_custom_call.1} parent=5 // pred_check
        %p1675 = pneg %p1674
      $region130: #{tpu_custom_call.1} parent=5 // pred_check_branch
        %1677 = sbr.rel (%p1675) target = $region132
      $region131: #{tpu_custom_call.1} parent=5 // pred_region
        %s1678 = ssub.s32 %s41, 2
        // Predicated region
        $region133: #{tpu_custom_call.1} parent=131 // pred_check
          %p1679 = pneg %p458
        $region134: #{tpu_custom_call.1} parent=131 // pred_check_branch
          %1681 = sbr.rel (%p1679) target = $region136
        $region135: #{tpu_custom_call.1} parent=131 // pred_region
          %s1682 = sand.u32 %s443, 1
          %s1683 = scalar_lea.sflag [#allocation6], %s1682
          %s1684 = sand.u32 %s443, 1
          %s1685 = smul.addr %s1684, 8
          %s1686 = scalar_lea.vmem [#allocation18], %s1685
          %1688 = dma.done %s1683, 128
        $region136: #{tpu_custom_call.1} parent=131 // pred_fallthru
          _
      $region132: #{tpu_custom_call.1} parent=5 // pred_fallthru
        _
    $region6: #{tpu_custom_call.1} parent=1 // loop_footer
      %s45 = sadd.s32 1, %s41
    $region7: #{tpu_custom_call.1} parent=1 // loop_footer_branch
      %40 = sbr.rel target = $region3
    $region8: #{tpu_custom_call.1} parent=1 // loop_exit
      _
    %1689 = vsyncpa [#allocation5], 1
    %s1690 = scalar_lea.sflag [#allocation5], 1
    %1691 = vsyncpa %s1690, 1
    %1692 = vsyncpa [#allocation8], 1
    %1693 = vsyncpa [#allocation11], 1
    %1694 = vsyncpa [#allocation14], 1
    %1695 = vsyncpa [#allocation17], 1
    %1696 = vsyncpa [#allocation6], 1
    %s1697 = scalar_lea.sflag [#allocation6], 1
    %1698 = vsyncpa %s1697, 1

</llo_original>
